<compile_context>
chip_gen: v7x
topology: tpu7x:2x2x1
jax: 0.10.0
libtpu: 0.0.40
codegen_flags: <defaults>
</compile_context>

<pallas_src>
import functools

import jax
import jax.numpy as jnp
from jax import lax
from jax.experimental import pallas as pl
from jax.experimental.pallas import tpu as pltpu

# 32 MiB scoped VMEM: raises v5e's 16 MiB default, safe on v6e/v7x.
_VMEM_LIMIT = 32 * 1024 * 1024
# Left halo padding of the dw-conv scratch; 8 keeps the interior store
# sublane-aligned (sublane tile = 8) while providing the 1-column zero halo.
_PAD = 8


# ----------------------------------------------------------------------------
# Fused PSABlock kernel (one image per grid step)
# ----------------------------------------------------------------------------
def _psablock_kernel(x_ref, w_qkv_ref, b_qkv_ref, w_dw_ref, b_dw_ref,
                     w_proj_ref, b_proj_ref, w_ffn1_ref, b_ffn1_ref,
                     w_ffn2_ref, b_ffn2_ref, o_ref, attn_scr, vpad_scr,
                     *, num_head, dk, dh, H, W):
    L = H * W
    C = num_head * dh
    nq = num_head * dk

    x = x_ref[0]                                       # (L, C) f32
    xb = x.astype(jnp.bfloat16)

    # ---- qkv 1x1 conv + folded BN (identity act). Columns are
    # [q all heads | k all heads | v all heads]; softmax scale already folded
    # into the q columns and bias at init time.
    qkv_f32 = jnp.dot(xb, w_qkv_ref[...],
                      preferred_element_type=jnp.float32) + b_qkv_ref[...]
    qkv = qkv_f32.astype(jnp.bfloat16)                 # (L, 2*nq + C)

    # ---- per-head attention: o = softmax(q k^T) v in (L, d) orientation
    # (equivalent to PyTorch's softmax(q^T k) applied as v @ attn^T).
    # TODO(synk): for real YOLO feature maps (L = 400..6400) tile over kv with
    # an online softmax instead of materializing the full (L, L) score matrix.
    for h in range(num_head):
        q = qkv[:, h * dk:(h + 1) * dk]                          # (L, dk)
        k = qkv[:, nq + h * dk:nq + (h + 1) * dk]                # (L, dk)
        v = qkv[:, 2 * nq + h * dh:2 * nq + (h + 1) * dh]        # (L, dh)
        s = lax.dot_general(q, k, (((1,), (1,)), ((), ())),
                            preferred_element_type=jnp.float32)  # (L, L) f32
        m = jnp.max(s, axis=-1, keepdims=True)
        p = jnp.exp(s - m)
        p = p * pl.reciprocal(jnp.sum(p, axis=-1, keepdims=True), approx=True)
        attn_scr[:, h * dh:(h + 1) * dh] = jnp.dot(
            p.astype(jnp.bfloat16), v, preferred_element_type=jnp.float32)
    attn_o = attn_scr[...]                                       # (L, C) f32

    # ---- positional encoding: depthwise 3x3 conv (+ folded BN) over v,
    # fused with the "attn + pe" add.  Halo handled in VMEM scratch (no HBM
    # pad); f32 cast hoisted out of the 9-tap loop.
    v_img = qkv_f32[:, 2 * nq:].reshape(H, W, C)                 # head-major chans
    vpad_scr[...] = jnp.zeros_like(vpad_scr)
    vpad_scr[1:H + 1, _PAD:_PAD + W, :] = v_img                  # aligned store
    vp = vpad_scr[...]                                           # (H+2, _PAD+W+1, C)
    w_dw = w_dw_ref[...]                                         # (9, C) f32
    acc = attn_o.reshape(H, W, C) + b_dw_ref[...]                # attn + BN bias
    for dy in range(3):
        for dx in range(3):
            tap = vp[dy:dy + H, _PAD - 1 + dx:_PAD - 1 + dx + W, :]
            acc = acc + tap * w_dw[dy * 3 + dx]
    attn_pre = acc.reshape(L, C)

    # ---- attention projection (1x1 conv + BN) + residual #1 (f32).
    y = jnp.dot(attn_pre.astype(jnp.bfloat16), w_proj_ref[...],
                preferred_element_type=jnp.float32) + b_proj_ref[...]
    x1 = x + y

    # ---- FFN: Conv(C->2C)+BN+SiLU, Conv(2C->C)+BN+Identity, residual #2.
    # The (L, 2C) intermediate never leaves VMEM.
    hmid = jnp.dot(x1.astype(jnp.bfloat16), w_ffn1_ref[...],
                   preferred_element_type=jnp.float32) + b_ffn1_ref[...]
    hmid = hmid * jax.nn.sigmoid(hmid)                           # SiLU, f32
    y2 = jnp.dot(hmid.astype(jnp.bfloat16), w_ffn2_ref[...],
                 preferred_element_type=jnp.float32) + b_ffn2_ref[...]
    o_ref[0] = (x1 + y2).astype(o_ref.dtype)


def psablock_forward(x_nhwc, params, num_head):
    """x_nhwc: (B, H, W, C) f32. Returns (B, H, W, C) f32."""
    B, H, W, C = x_nhwc.shape
    L = H * W
    dh = C // num_head
    dk = dh // 2
    cqkv = num_head * (2 * dk + dh)
    x = x_nhwc.reshape(B, L, C)

    kernel = functools.partial(_psablock_kernel, num_head=num_head,
                               dk=dk, dh=dh, H=H, W=W)
    # NOTE: the resident weight/bias specs (constant index_map) could use
    # pipeline_mode=pl.Buffered(1) to avoid double-buffer duplication at large
    # C on v7x; at C=64 the duplication is a few tens of KB and irrelevant.
    out = pl.pallas_call(
        kernel,
        out_shape=jax.ShapeDtypeStruct((B, L, C), jnp.float32),
        grid=(B,),
        in_specs=[
            pl.BlockSpec((1, L, C), lambda b: (b, 0, 0)),        # x (per image)
            pl.BlockSpec((C, cqkv), lambda b: (0, 0)),           # w_qkv resident
            pl.BlockSpec((1, cqkv), lambda b: (0, 0)),           # b_qkv
            pl.BlockSpec((9, C), lambda b: (0, 0)),              # w_dw
            pl.BlockSpec((1, C), lambda b: (0, 0)),              # b_dw
            pl.BlockSpec((C, C), lambda b: (0, 0)),              # w_proj
            pl.BlockSpec((1, C), lambda b: (0, 0)),              # b_proj
            pl.BlockSpec((C, 2 * C), lambda b: (0, 0)),          # w_ffn1
            pl.BlockSpec((1, 2 * C), lambda b: (0, 0)),          # b_ffn1
            pl.BlockSpec((2 * C, C), lambda b: (0, 0)),          # w_ffn2
            pl.BlockSpec((1, C), lambda b: (0, 0)),              # b_ffn2
        ],
        out_specs=pl.BlockSpec((1, L, C), lambda b: (b, 0, 0)),
        scratch_shapes=[
            pltpu.VMEM((L, C), jnp.float32),                     # attn output
            pltpu.VMEM((H + 2, _PAD + W + 1, C), jnp.float32),   # padded v halo
        ],
        compiler_params=pltpu.CompilerParams(
            dimension_semantics=("parallel",),                   # B steps -> 2 TCs on v7x
            vmem_limit_bytes=_VMEM_LIMIT),
    )(x,
      params["w_qkv"], params["b_qkv"].reshape(1, cqkv),
      params["w_dw"], params["b_dw"].reshape(1, C),
      params["w_proj"], params["b_proj"].reshape(1, C),
      params["w_ffn1"], params["b_ffn1"].reshape(1, 2 * C),
      params["w_ffn2"], params["b_ffn2"].reshape(1, C))
    return out.reshape(B, H, W, C)


# ----------------------------------------------------------------------------
# Parameter construction (deterministic, synthetic) with BatchNorm folding
# ----------------------------------------------------------------------------
def _fold_bn(gamma, beta, mean, var, eps=1e-3):
    s = gamma / jnp.sqrt(var + eps)
    return s, beta - mean * s


def _bn_params(key, c):
    k1, k2, k3, k4 = jax.random.split(key, 4)
    gamma = 1.0 + 0.1 * jax.random.normal(k1, (c,), jnp.float32)
    beta = 0.1 * jax.random.normal(k2, (c,), jnp.float32)
    mean = 0.1 * jax.random.normal(k3, (c,), jnp.float32)
    var = jax.random.uniform(k4, (c,), jnp.float32, minval=0.5, maxval=1.5)
    return gamma, beta, mean, var


def init_psablock_params(key, ch, num_head):
    dh = ch // num_head
    dk = dh // 2
    chunk = 2 * dk + dh
    cqkv = num_head * chunk
    ks = jax.random.split(key, 10)

    def conv_bn(kw, kb, cin, cout):
        w = 0.05 * jax.random.normal(kw, (cin, cout), jnp.float32)
        s, bias = _fold_bn(*_bn_params(kb, cout))
        return w * s[None, :], bias

    params = {}

    # Attention.qkv : Conv(ch, cqkv, k=1, Identity).  Built in PyTorch channel
    # order (per-head [q|k|v]), then columns permuted to
    # [q all heads | k all heads | v all heads] (v head-major == the
    # v.reshape(b,c,h,w) channel order), and the softmax scale dk^-0.5 folded
    # into the q columns/bias.
    w_qkv, b_qkv = conv_bn(ks[0], ks[1], ch, cqkv)
    perm = ([h * chunk + i for h in range(num_head) for i in range(dk)]
            + [h * chunk + dk + i for h in range(num_head) for i in range(dk)]
            + [h * chunk + 2 * dk + i for h in range(num_head) for i in range(dh)])
    perm = jnp.asarray(perm, jnp.int32)
    w_qkv = w_qkv[:, perm]
    b_qkv = b_qkv[perm]
    scale = dk ** (-0.5)
    col_scale = jnp.concatenate([
        jnp.full((num_head * dk,), scale, jnp.float32),
        jnp.ones((cqkv - num_head * dk,), jnp.float32)])
    params["w_qkv"] = (w_qkv * col_scale[None, :]).astype(jnp.bfloat16)
    params["b_qkv"] = b_qkv * col_scale

    # Attention.conv1 : depthwise Conv(ch, ch, k=3, p=1, g=ch, Identity) — VPU path, f32.
    w_dw = 0.05 * jax.random.normal(ks[2], (9, ch), jnp.float32)
    s_dw, b_dw = _fold_bn(*_bn_params(ks[3], ch))
    params["w_dw"], params["b_dw"] = w_dw * s_dw[None, :], b_dw

    # Attention.conv2 : Conv(ch, ch, k=1, Identity)
    w, b = conv_bn(ks[4], ks[5], ch, ch)
    params["w_proj"], params["b_proj"] = w.astype(jnp.bfloat16), b
    # PSABlock.conv2[0] : Conv(ch, 2*ch, k=1, SiLU)
    w, b = conv_bn(ks[6], ks[7], ch, 2 * ch)
    params["w_ffn1"], params["b_ffn1"] = w.astype(jnp.bfloat16), b
    # PSABlock.conv2[1] : Conv(2*ch, ch, k=1, Identity)
    w, b = conv_bn(ks[8], ks[9], 2 * ch, ch)
    params["w_ffn2"], params["b_ffn2"] = w.astype(jnp.bfloat16), b
    return params


# ----------------------------------------------------------------------------
if __name__ == "__main__":
    B, C, H, W = 2, 64, 8, 8
    NUM_HEAD = 2

    key = jax.random.PRNGKey(0)
    k_x, k_p = jax.random.split(key)

    # Module-facing input is NCHW (PyTorch convention); kernel uses NHWC/(L,C).
    x_nchw = jax.random.normal(k_x, (B, C, H, W), jnp.float32)
    x_nhwc = jnp.transpose(x_nchw, (0, 2, 3, 1))

    params = init_psablock_params(k_p, C, NUM_HEAD)

    out_nhwc = psablock_forward(x_nhwc, params, NUM_HEAD)
    out_nchw = jnp.transpose(out_nhwc, (0, 3, 1, 2))   # back to PyTorch layout
    jax.block_until_ready(out_nchw)

    assert out_nchw.shape == (B, C, H, W)
    assert bool(jnp.all(jnp.isfinite(out_nchw)))
    print("KERNEL_OK")
</pallas_src>

<mosaic_0001>
module attributes {stable_mosaic.version = 11 : i64} {
  func.func @_psablock_kernel(%arg0: i32, %arg1: memref<1x64x64xf32, #tpu.memory_space<vmem>>, %arg2: memref<64x128xbf16, #tpu.memory_space<vmem>>, %arg3: memref<1x128xf32, #tpu.memory_space<vmem>>, %arg4: memref<9x64xf32, #tpu.memory_space<vmem>>, %arg5: memref<1x64xf32, #tpu.memory_space<vmem>>, %arg6: memref<64x64xbf16, #tpu.memory_space<vmem>>, %arg7: memref<1x64xf32, #tpu.memory_space<vmem>>, %arg8: memref<64x128xbf16, #tpu.memory_space<vmem>>, %arg9: memref<1x128xf32, #tpu.memory_space<vmem>>, %arg10: memref<128x64xbf16, #tpu.memory_space<vmem>>, %arg11: memref<1x64xf32, #tpu.memory_space<vmem>>, %arg12: memref<1x64x64xf32, #tpu.memory_space<vmem>>, %arg13: memref<64x64xf32, #tpu.memory_space<vmem>>, %arg14: memref<10x17x64xf32, #tpu.memory_space<vmem>>) attributes {dimension_semantics = [#tpu.dimension_semantics<parallel>], iteration_bounds = array<i64: 2>, scalar_prefetch = 0 : i64, scratch_operands = 2 : i64, tpu.core_type = #tpu.core_type<tc>, window_params = [{transform_indices = @transform_0, window_bounds = array<i64: 1, 64, 64>}, {pipeline_mode = #tpu.pipeline_mode<synchronous>, transform_indices = @transform_1, window_bounds = array<i64: 64, 128>}, {pipeline_mode = #tpu.pipeline_mode<synchronous>, transform_indices = @transform_2, window_bounds = array<i64: 1, 128>}, {pipeline_mode = #tpu.pipeline_mode<synchronous>, transform_indices = @transform_3, window_bounds = array<i64: 9, 64>}, {pipeline_mode = #tpu.pipeline_mode<synchronous>, transform_indices = @transform_4, window_bounds = array<i64: 1, 64>}, {pipeline_mode = #tpu.pipeline_mode<synchronous>, transform_indices = @transform_5, window_bounds = array<i64: 64, 64>}, {pipeline_mode = #tpu.pipeline_mode<synchronous>, transform_indices = @transform_6, window_bounds = array<i64: 1, 64>}, {pipeline_mode = #tpu.pipeline_mode<synchronous>, transform_indices = @transform_7, window_bounds = array<i64: 64, 128>}, {pipeline_mode = #tpu.pipeline_mode<synchronous>, transform_indices = @transform_8, window_bounds = array<i64: 1, 128>}, {pipeline_mode = #tpu.pipeline_mode<synchronous>, transform_indices = @transform_9, window_bounds = array<i64: 128, 64>}, {pipeline_mode = #tpu.pipeline_mode<synchronous>, transform_indices = @transform_10, window_bounds = array<i64: 1, 64>}, {transform_indices = @transform_11, window_bounds = array<i64: 1, 64, 64>}]} {
    %c0 = arith.constant 0 : index
    %c0_0 = arith.constant 0 : index
    %c0_1 = arith.constant 0 : index
    %0 = vector.load %arg1[%c0, %c0_0, %c0_1] : memref<1x64x64xf32, #tpu.memory_space<vmem>>, vector<1x64x64xf32>
    %1 = vector.shape_cast %0 : vector<1x64x64xf32> to vector<64x64xf32>
    %2 = arith.truncf %1 : vector<64x64xf32> to vector<64x64xbf16>
    %c0_2 = arith.constant 0 : index
    %c0_3 = arith.constant 0 : index
    %3 = vector.load %arg2[%c0_2, %c0_3] : memref<64x128xbf16, #tpu.memory_space<vmem>>, vector<64x128xbf16>
    %cst = arith.constant dense<0.000000e+00> : vector<64x128xf32>
    %4 = tpu.matmul %2, %3, %cst {dimension_numbers = #tpu.dot_dimension_numbers<[1], [0], [0], [1], [0, 0, 1, 1], [], []>} : vector<64x64xbf16>, vector<64x128xbf16>, vector<64x128xf32> -> vector<64x128xf32>
    %c0_4 = arith.constant 0 : index
    %c0_5 = arith.constant 0 : index
    %5 = vector.load %arg3[%c0_4, %c0_5] : memref<1x128xf32, #tpu.memory_space<vmem>>, vector<1x128xf32>
    %6 = vector.broadcast %5 : vector<1x128xf32> to vector<64x128xf32>
    %7 = arith.addf %4, %6 : vector<64x128xf32>
    %8 = arith.truncf %7 : vector<64x128xf32> to vector<64x128xbf16>
    %9 = vector.extract_strided_slice %8 {offsets = [0, 0], sizes = [64, 16], strides = [1, 1]} : vector<64x128xbf16> to vector<64x16xbf16>
    %10 = vector.extract_strided_slice %8 {offsets = [0, 32], sizes = [64, 16], strides = [1, 1]} : vector<64x128xbf16> to vector<64x16xbf16>
    %11 = vector.extract_strided_slice %8 {offsets = [0, 64], sizes = [64, 32], strides = [1, 1]} : vector<64x128xbf16> to vector<64x32xbf16>
    %cst_6 = arith.constant dense<0.000000e+00> : vector<64x64xf32>
    %12 = tpu.matmul %9, %10, %cst_6 {dimension_numbers = #tpu.dot_dimension_numbers<[1], [1], [0], [0], [0, 0, 1, 0], [], []>} : vector<64x16xbf16>, vector<64x16xbf16>, vector<64x64xf32> -> vector<64x64xf32>
    %cst_7 = arith.constant dense<0xFF800000> : vector<64xf32>
    %13 = vector.multi_reduction <maximumf>, %12, %cst_7 [1] : vector<64x64xf32> to vector<64xf32>
    %14 = vector.shape_cast %13 : vector<64xf32> to vector<64x1xf32>
    %15 = vector.broadcast %14 : vector<64x1xf32> to vector<64x64xf32>
    %16 = arith.subf %12, %15 : vector<64x64xf32>
    %17 = math.exp %16 : vector<64x64xf32>
    %cst_8 = arith.constant dense<0.000000e+00> : vector<64xf32>
    %18 = vector.multi_reduction <add>, %17, %cst_8 [1] : vector<64x64xf32> to vector<64xf32>
    %19 = vector.shape_cast %18 : vector<64xf32> to vector<64x1xf32>
    %20 = tpu.reciprocal %19 {approx = true} : vector<64x1xf32> -> vector<64x1xf32>
    %21 = vector.broadcast %20 : vector<64x1xf32> to vector<64x64xf32>
    %22 = arith.mulf %17, %21 : vector<64x64xf32>
    %23 = arith.truncf %22 : vector<64x64xf32> to vector<64x64xbf16>
    %cst_9 = arith.constant dense<0.000000e+00> : vector<64x32xf32>
    %24 = tpu.matmul %23, %11, %cst_9 {dimension_numbers = #tpu.dot_dimension_numbers<[1], [0], [0], [1], [0, 0, 1, 1], [], []>} : vector<64x64xbf16>, vector<64x32xbf16>, vector<64x32xf32> -> vector<64x32xf32>
    %c0_10 = arith.constant 0 : index
    %c0_11 = arith.constant 0 : index
    %25 = vector.load %arg13[%c0_10, %c0_11] : memref<64x64xf32, #tpu.memory_space<vmem>>, vector<64x32xf32>
    tpu.vector_store %arg13[%c0_10, %c0_11], %24 {strides = array<i32>} : memref<64x64xf32, #tpu.memory_space<vmem>>, vector<64x32xf32>,
    %26 = vector.extract_strided_slice %8 {offsets = [0, 16], sizes = [64, 16], strides = [1, 1]} : vector<64x128xbf16> to vector<64x16xbf16>
    %27 = vector.extract_strided_slice %8 {offsets = [0, 48], sizes = [64, 16], strides = [1, 1]} : vector<64x128xbf16> to vector<64x16xbf16>
    %28 = vector.extract_strided_slice %8 {offsets = [0, 96], sizes = [64, 32], strides = [1, 1]} : vector<64x128xbf16> to vector<64x32xbf16>
    %cst_12 = arith.constant dense<0.000000e+00> : vector<64x64xf32>
    %29 = tpu.matmul %26, %27, %cst_12 {dimension_numbers = #tpu.dot_dimension_numbers<[1], [1], [0], [0], [0, 0, 1, 0], [], []>} : vector<64x16xbf16>, vector<64x16xbf16>, vector<64x64xf32> -> vector<64x64xf32>
    %cst_13 = arith.constant dense<0xFF800000> : vector<64xf32>
    %30 = vector.multi_reduction <maximumf>, %29, %cst_13 [1] : vector<64x64xf32> to vector<64xf32>
    %31 = vector.shape_cast %30 : vector<64xf32> to vector<64x1xf32>
    %32 = vector.broadcast %31 : vector<64x1xf32> to vector<64x64xf32>
    %33 = arith.subf %29, %32 : vector<64x64xf32>
    %34 = math.exp %33 : vector<64x64xf32>
    %cst_14 = arith.constant dense<0.000000e+00> : vector<64xf32>
    %35 = vector.multi_reduction <add>, %34, %cst_14 [1] : vector<64x64xf32> to vector<64xf32>
    %36 = vector.shape_cast %35 : vector<64xf32> to vector<64x1xf32>
    %37 = tpu.reciprocal %36 {approx = true} : vector<64x1xf32> -> vector<64x1xf32>
    %38 = vector.broadcast %37 : vector<64x1xf32> to vector<64x64xf32>
    %39 = arith.mulf %34, %38 : vector<64x64xf32>
    %40 = arith.truncf %39 : vector<64x64xf32> to vector<64x64xbf16>
    %cst_15 = arith.constant dense<0.000000e+00> : vector<64x32xf32>
    %41 = tpu.matmul %40, %28, %cst_15 {dimension_numbers = #tpu.dot_dimension_numbers<[1], [0], [0], [1], [0, 0, 1, 1], [], []>} : vector<64x64xbf16>, vector<64x32xbf16>, vector<64x32xf32> -> vector<64x32xf32>
    %c0_16 = arith.constant 0 : index
    %c32 = arith.constant 32 : index
    %42 = vector.load %arg13[%c0_16, %c32] : memref<64x64xf32, #tpu.memory_space<vmem>>, vector<64x32xf32>
    tpu.vector_store %arg13[%c0_16, %c32], %41 {strides = array<i32>} : memref<64x64xf32, #tpu.memory_space<vmem>>, vector<64x32xf32>,
    %c0_17 = arith.constant 0 : index
    %c0_18 = arith.constant 0 : index
    %43 = vector.load %arg13[%c0_17, %c0_18] : memref<64x64xf32, #tpu.memory_space<vmem>>, vector<64x64xf32>
    %44 = vector.extract_strided_slice %7 {offsets = [0, 64], sizes = [64, 64], strides = [1, 1]} : vector<64x128xf32> to vector<64x64xf32>
    %45 = vector.shape_cast %44 : vector<64x64xf32> to vector<8x8x64xf32>
    %cst_19 = arith.constant 0.000000e+00 : f32
    %46 = vector.broadcast %cst_19 : f32 to vector<10x17x64xf32>
    %c0_20 = arith.constant 0 : index
    %c0_21 = arith.constant 0 : index
    %c0_22 = arith.constant 0 : index
    %47 = vector.load %arg14[%c0_20, %c0_21, %c0_22] : memref<10x17x64xf32, #tpu.memory_space<vmem>>, vector<10x17x64xf32>
    tpu.vector_store %arg14[%c0_20, %c0_21, %c0_22], %46 {strides = array<i32>} : memref<10x17x64xf32, #tpu.memory_space<vmem>>, vector<10x17x64xf32>,
    %c1 = arith.constant 1 : index
    %c8 = arith.constant 8 : index
    %c0_23 = arith.constant 0 : index
    %48 = vector.load %arg14[%c1, %c8, %c0_23] : memref<10x17x64xf32, #tpu.memory_space<vmem>>, vector<8x8x64xf32>
    tpu.vector_store %arg14[%c1, %c8, %c0_23], %45 {strides = array<i32>} : memref<10x17x64xf32, #tpu.memory_space<vmem>>, vector<8x8x64xf32>,
    %c0_24 = arith.constant 0 : index
    %c0_25 = arith.constant 0 : index
    %c0_26 = arith.constant 0 : index
    %49 = vector.load %arg14[%c0_24, %c0_25, %c0_26] : memref<10x17x64xf32, #tpu.memory_space<vmem>>, vector<10x17x64xf32>
    %c0_27 = arith.constant 0 : index
    %c0_28 = arith.constant 0 : index
    %50 = vector.load %arg4[%c0_27, %c0_28] : memref<9x64xf32, #tpu.memory_space<vmem>>, vector<9x64xf32>
    %51 = vector.shape_cast %43 : vector<64x64xf32> to vector<8x8x64xf32>
    %c0_29 = arith.constant 0 : index
    %c0_30 = arith.constant 0 : index
    %52 = vector.load %arg5[%c0_29, %c0_30] : memref<1x64xf32, #tpu.memory_space<vmem>>, vector<1x64xf32>
    %53 = vector.shape_cast %52 : vector<1x64xf32> to vector<1x1x64xf32>
    %54 = vector.broadcast %53 : vector<1x1x64xf32> to vector<8x8x64xf32>
    %55 = arith.addf %51, %54 : vector<8x8x64xf32>
    %56 = vector.extract_strided_slice %49 {offsets = [0, 7, 0], sizes = [8, 8, 64], strides = [1, 1, 1]} : vector<10x17x64xf32> to vector<8x8x64xf32>
    %57 = vector.extract_strided_slice %50 {offsets = [0, 0], sizes = [1, 64], strides = [1, 1]} : vector<9x64xf32> to vector<1x64xf32>
    %58 = vector.shape_cast %57 : vector<1x64xf32> to vector<64xf32>
    %59 = vector.shape_cast %58 : vector<64xf32> to vector<1x1x64xf32>
    %60 = vector.broadcast %59 : vector<1x1x64xf32> to vector<8x8x64xf32>
    %61 = arith.mulf %56, %60 : vector<8x8x64xf32>
    %62 = arith.addf %55, %61 : vector<8x8x64xf32>
    %63 = vector.extract_strided_slice %49 {offsets = [0, 8, 0], sizes = [8, 8, 64], strides = [1, 1, 1]} : vector<10x17x64xf32> to vector<8x8x64xf32>
    %64 = vector.extract_strided_slice %50 {offsets = [1, 0], sizes = [1, 64], strides = [1, 1]} : vector<9x64xf32> to vector<1x64xf32>
    %65 = vector.shape_cast %64 : vector<1x64xf32> to vector<64xf32>
    %66 = vector.shape_cast %65 : vector<64xf32> to vector<1x1x64xf32>
    %67 = vector.broadcast %66 : vector<1x1x64xf32> to vector<8x8x64xf32>
    %68 = arith.mulf %63, %67 : vector<8x8x64xf32>
    %69 = arith.addf %62, %68 : vector<8x8x64xf32>
    %70 = vector.extract_strided_slice %49 {offsets = [0, 9, 0], sizes = [8, 8, 64], strides = [1, 1, 1]} : vector<10x17x64xf32> to vector<8x8x64xf32>
    %71 = vector.extract_strided_slice %50 {offsets = [2, 0], sizes = [1, 64], strides = [1, 1]} : vector<9x64xf32> to vector<1x64xf32>
    %72 = vector.shape_cast %71 : vector<1x64xf32> to vector<64xf32>
    %73 = vector.shape_cast %72 : vector<64xf32> to vector<1x1x64xf32>
    %74 = vector.broadcast %73 : vector<1x1x64xf32> to vector<8x8x64xf32>
    %75 = arith.mulf %70, %74 : vector<8x8x64xf32>
    %76 = arith.addf %69, %75 : vector<8x8x64xf32>
    %77 = vector.extract_strided_slice %49 {offsets = [1, 7, 0], sizes = [8, 8, 64], strides = [1, 1, 1]} : vector<10x17x64xf32> to vector<8x8x64xf32>
    %78 = vector.extract_strided_slice %50 {offsets = [3, 0], sizes = [1, 64], strides = [1, 1]} : vector<9x64xf32> to vector<1x64xf32>
    %79 = vector.shape_cast %78 : vector<1x64xf32> to vector<64xf32>
    %80 = vector.shape_cast %79 : vector<64xf32> to vector<1x1x64xf32>
    %81 = vector.broadcast %80 : vector<1x1x64xf32> to vector<8x8x64xf32>
    %82 = arith.mulf %77, %81 : vector<8x8x64xf32>
    %83 = arith.addf %76, %82 : vector<8x8x64xf32>
    %84 = vector.extract_strided_slice %49 {offsets = [1, 8, 0], sizes = [8, 8, 64], strides = [1, 1, 1]} : vector<10x17x64xf32> to vector<8x8x64xf32>
    %85 = vector.extract_strided_slice %50 {offsets = [4, 0], sizes = [1, 64], strides = [1, 1]} : vector<9x64xf32> to vector<1x64xf32>
    %86 = vector.shape_cast %85 : vector<1x64xf32> to vector<64xf32>
    %87 = vector.shape_cast %86 : vector<64xf32> to vector<1x1x64xf32>
    %88 = vector.broadcast %87 : vector<1x1x64xf32> to vector<8x8x64xf32>
    %89 = arith.mulf %84, %88 : vector<8x8x64xf32>
    %90 = arith.addf %83, %89 : vector<8x8x64xf32>
    %91 = vector.extract_strided_slice %49 {offsets = [1, 9, 0], sizes = [8, 8, 64], strides = [1, 1, 1]} : vector<10x17x64xf32> to vector<8x8x64xf32>
    %92 = vector.extract_strided_slice %50 {offsets = [5, 0], sizes = [1, 64], strides = [1, 1]} : vector<9x64xf32> to vector<1x64xf32>
    %93 = vector.shape_cast %92 : vector<1x64xf32> to vector<64xf32>
    %94 = vector.shape_cast %93 : vector<64xf32> to vector<1x1x64xf32>
    %95 = vector.broadcast %94 : vector<1x1x64xf32> to vector<8x8x64xf32>
    %96 = arith.mulf %91, %95 : vector<8x8x64xf32>
    %97 = arith.addf %90, %96 : vector<8x8x64xf32>
    %98 = vector.extract_strided_slice %49 {offsets = [2, 7, 0], sizes = [8, 8, 64], strides = [1, 1, 1]} : vector<10x17x64xf32> to vector<8x8x64xf32>
    %99 = vector.extract_strided_slice %50 {offsets = [6, 0], sizes = [1, 64], strides = [1, 1]} : vector<9x64xf32> to vector<1x64xf32>
    %100 = vector.shape_cast %99 : vector<1x64xf32> to vector<64xf32>
    %101 = vector.shape_cast %100 : vector<64xf32> to vector<1x1x64xf32>
    %102 = vector.broadcast %101 : vector<1x1x64xf32> to vector<8x8x64xf32>
    %103 = arith.mulf %98, %102 : vector<8x8x64xf32>
    %104 = arith.addf %97, %103 : vector<8x8x64xf32>
    %105 = vector.extract_strided_slice %49 {offsets = [2, 8, 0], sizes = [8, 8, 64], strides = [1, 1, 1]} : vector<10x17x64xf32> to vector<8x8x64xf32>
    %106 = vector.extract_strided_slice %50 {offsets = [7, 0], sizes = [1, 64], strides = [1, 1]} : vector<9x64xf32> to vector<1x64xf32>
    %107 = vector.shape_cast %106 : vector<1x64xf32> to vector<64xf32>
    %108 = vector.shape_cast %107 : vector<64xf32> to vector<1x1x64xf32>
    %109 = vector.broadcast %108 : vector<1x1x64xf32> to vector<8x8x64xf32>
    %110 = arith.mulf %105, %109 : vector<8x8x64xf32>
    %111 = arith.addf %104, %110 : vector<8x8x64xf32>
    %112 = vector.extract_strided_slice %49 {offsets = [2, 9, 0], sizes = [8, 8, 64], strides = [1, 1, 1]} : vector<10x17x64xf32> to vector<8x8x64xf32>
    %113 = vector.extract_strided_slice %50 {offsets = [8, 0], sizes = [1, 64], strides = [1, 1]} : vector<9x64xf32> to vector<1x64xf32>
    %114 = vector.shape_cast %113 : vector<1x64xf32> to vector<64xf32>
    %115 = vector.shape_cast %114 : vector<64xf32> to vector<1x1x64xf32>
    %116 = vector.broadcast %115 : vector<1x1x64xf32> to vector<8x8x64xf32>
    %117 = arith.mulf %112, %116 : vector<8x8x64xf32>
    %118 = arith.addf %111, %117 : vector<8x8x64xf32>
    %119 = vector.shape_cast %118 : vector<8x8x64xf32> to vector<64x64xf32>
    %120 = arith.truncf %119 : vector<64x64xf32> to vector<64x64xbf16>
    %c0_31 = arith.constant 0 : index
    %c0_32 = arith.constant 0 : index
    %121 = vector.load %arg6[%c0_31, %c0_32] : memref<64x64xbf16, #tpu.memory_space<vmem>>, vector<64x64xbf16>
    %cst_33 = arith.constant dense<0.000000e+00> : vector<64x64xf32>
    %122 = tpu.matmul %120, %121, %cst_33 {dimension_numbers = #tpu.dot_dimension_numbers<[1], [0], [0], [1], [0, 0, 1, 1], [], []>} : vector<64x64xbf16>, vector<64x64xbf16>, vector<64x64xf32> -> vector<64x64xf32>
    %c0_34 = arith.constant 0 : index
    %c0_35 = arith.constant 0 : index
    %123 = vector.load %arg7[%c0_34, %c0_35] : memref<1x64xf32, #tpu.memory_space<vmem>>, vector<1x64xf32>
    %124 = vector.broadcast %123 : vector<1x64xf32> to vector<64x64xf32>
    %125 = arith.addf %122, %124 : vector<64x64xf32>
    %126 = arith.addf %1, %125 : vector<64x64xf32>
    %127 = arith.truncf %126 : vector<64x64xf32> to vector<64x64xbf16>
    %c0_36 = arith.constant 0 : index
    %c0_37 = arith.constant 0 : index
    %128 = vector.load %arg8[%c0_36, %c0_37] : memref<64x128xbf16, #tpu.memory_space<vmem>>, vector<64x128xbf16>
    %cst_38 = arith.constant dense<0.000000e+00> : vector<64x128xf32>
    %129 = tpu.matmul %127, %128, %cst_38 {dimension_numbers = #tpu.dot_dimension_numbers<[1], [0], [0], [1], [0, 0, 1, 1], [], []>} : vector<64x64xbf16>, vector<64x128xbf16>, vector<64x128xf32> -> vector<64x128xf32>
    %c0_39 = arith.constant 0 : index
    %c0_40 = arith.constant 0 : index
    %130 = vector.load %arg9[%c0_39, %c0_40] : memref<1x128xf32, #tpu.memory_space<vmem>>, vector<1x128xf32>
    %131 = vector.broadcast %130 : vector<1x128xf32> to vector<64x128xf32>
    %132 = arith.addf %129, %131 : vector<64x128xf32>
    %133 = arith.negf %132 : vector<64x128xf32>
    %134 = math.exp %133 : vector<64x128xf32>
    %cst_41 = arith.constant 1.000000e+00 : f32
    %135 = vector.broadcast %cst_41 : f32 to vector<64x128xf32>
    %136 = arith.addf %135, %134 : vector<64x128xf32>
    %137 = arith.divf %135, %136 : vector<64x128xf32>
    %138 = arith.mulf %132, %137 : vector<64x128xf32>
    %139 = arith.truncf %138 : vector<64x128xf32> to vector<64x128xbf16>
    %c0_42 = arith.constant 0 : index
    %c0_43 = arith.constant 0 : index
    %140 = vector.load %arg10[%c0_42, %c0_43] : memref<128x64xbf16, #tpu.memory_space<vmem>>, vector<128x64xbf16>
    %cst_44 = arith.constant dense<0.000000e+00> : vector<64x64xf32>
    %141 = tpu.matmul %139, %140, %cst_44 {dimension_numbers = #tpu.dot_dimension_numbers<[1], [0], [0], [1], [0, 0, 1, 1], [], []>} : vector<64x128xbf16>, vector<128x64xbf16>, vector<64x64xf32> -> vector<64x64xf32>
    %c0_45 = arith.constant 0 : index
    %c0_46 = arith.constant 0 : index
    %142 = vector.load %arg11[%c0_45, %c0_46] : memref<1x64xf32, #tpu.memory_space<vmem>>, vector<1x64xf32>
    %143 = vector.broadcast %142 : vector<1x64xf32> to vector<64x64xf32>
    %144 = arith.addf %141, %143 : vector<64x64xf32>
    %145 = arith.addf %126, %144 : vector<64x64xf32>
    %c0_47 = arith.constant 0 : index
    %c0_48 = arith.constant 0 : index
    %c0_49 = arith.constant 0 : index
    %146 = vector.load %arg12[%c0_47, %c0_48, %c0_49] : memref<1x64x64xf32, #tpu.memory_space<vmem>>, vector<1x64x64xf32>
    %147 = vector.shape_cast %146 : vector<1x64x64xf32> to vector<64x64xf32>
    %148 = vector.shape_cast %145 : vector<64x64xf32> to vector<1x64x64xf32>
    tpu.vector_store %arg12[%c0_47, %c0_48, %c0_49], %148 {strides = array<i32>} : memref<1x64x64xf32, #tpu.memory_space<vmem>>, vector<1x64x64xf32>,
    return
  }
  func.func @transform_0(%arg0: i32) -> (i32, i32, i32) {
    %c0_i32 = arith.constant 0 : i32
    %c0_i32_0 = arith.constant 0 : i32
    %c0_i32_1 = arith.constant 0 : i32
    return %arg0, %c0_i32, %c0_i32_0 : i32, i32, i32
  }
  func.func @transform_1(%arg0: i32) -> (i32, i32) {
    %c0_i32 = arith.constant 0 : i32
    %c0_i32_0 = arith.constant 0 : i32
    %c0_i32_1 = arith.constant 0 : i32
    return %c0_i32, %c0_i32_0 : i32, i32
  }
  func.func @transform_2(%arg0: i32) -> (i32, i32) {
    %c0_i32 = arith.constant 0 : i32
    %c0_i32_0 = arith.constant 0 : i32
    %c0_i32_1 = arith.constant 0 : i32
    return %c0_i32, %c0_i32_0 : i32, i32
  }
  func.func @transform_3(%arg0: i32) -> (i32, i32) {
    %c0_i32 = arith.constant 0 : i32
    %c0_i32_0 = arith.constant 0 : i32
    %c0_i32_1 = arith.constant 0 : i32
    return %c0_i32, %c0_i32_0 : i32, i32
  }
  func.func @transform_4(%arg0: i32) -> (i32, i32) {
    %c0_i32 = arith.constant 0 : i32
    %c0_i32_0 = arith.constant 0 : i32
    %c0_i32_1 = arith.constant 0 : i32
    return %c0_i32, %c0_i32_0 : i32, i32
  }
  func.func @transform_5(%arg0: i32) -> (i32, i32) {
    %c0_i32 = arith.constant 0 : i32
    %c0_i32_0 = arith.constant 0 : i32
    %c0_i32_1 = arith.constant 0 : i32
    return %c0_i32, %c0_i32_0 : i32, i32
  }
  func.func @transform_6(%arg0: i32) -> (i32, i32) {
    %c0_i32 = arith.constant 0 : i32
    %c0_i32_0 = arith.constant 0 : i32
    %c0_i32_1 = arith.constant 0 : i32
    return %c0_i32, %c0_i32_0 : i32, i32
  }
  func.func @transform_7(%arg0: i32) -> (i32, i32) {
    %c0_i32 = arith.constant 0 : i32
    %c0_i32_0 = arith.constant 0 : i32
    %c0_i32_1 = arith.constant 0 : i32
    return %c0_i32, %c0_i32_0 : i32, i32
  }
  func.func @transform_8(%arg0: i32) -> (i32, i32) {
    %c0_i32 = arith.constant 0 : i32
    %c0_i32_0 = arith.constant 0 : i32
    %c0_i32_1 = arith.constant 0 : i32
    return %c0_i32, %c0_i32_0 : i32, i32
  }
  func.func @transform_9(%arg0: i32) -> (i32, i32) {
    %c0_i32 = arith.constant 0 : i32
    %c0_i32_0 = arith.constant 0 : i32
    %c0_i32_1 = arith.constant 0 : i32
    return %c0_i32, %c0_i32_0 : i32, i32
  }
  func.func @transform_10(%arg0: i32) -> (i32, i32) {
    %c0_i32 = arith.constant 0 : i32
    %c0_i32_0 = arith.constant 0 : i32
    %c0_i32_1 = arith.constant 0 : i32
    return %c0_i32, %c0_i32_0 : i32, i32
  }
  func.func @transform_11(%arg0: i32) -> (i32, i32, i32) {
    %c0_i32 = arith.constant 0 : i32
    %c0_i32_0 = arith.constant 0 : i32
    %c0_i32_1 = arith.constant 0 : i32
    return %arg0, %c0_i32, %c0_i32_0 : i32, i32, i32
  }
}

</mosaic_0001>

<llo_original>
// kernel: tpu_custom_call.1
$region0: #{tpu_custom_call.1}
  #allocation0 [shape = 'u32[]', space=smem, size = 0x4, offset = 0x4, fixed_abs, tag = 'smem constant byte address 0x4 - core index']
  #allocation1 [shape = 'u32[144,128]{1,0:T(1,128)}', space=vmem, size = 0x12000, scoped, tag = 'internal scratch']
  #allocation2 [shape = 'f32[64,64]{1,0:T(8,128)}', space=vmem, size = 0x8000, scoped, tag = 'scratch operand']
  #allocation3 [shape = 'f32[10,17,64]{2,1,0:T(8,128)}', space=vmem, size = 0x1e000, scoped, tag = 'scratch operand']
  %s0 = inlined_call_operand.hbm [shape: f32[2,64,64], index: 0, kind: input, shape index: {}]
  %s1 = inlined_call_operand.vmem [shape: bf16[64,128], index: 1, kind: input, shape index: {}]
  %s2 = inlined_call_operand.vmem [shape: f32[1,128], index: 2, kind: input, shape index: {}]
  %s3 = inlined_call_operand.hbm [shape: f32[9,64], index: 3, kind: input, shape index: {}]
  %s4 = inlined_call_operand.vmem [shape: f32[1,64], index: 4, kind: input, shape index: {}]
  %s5 = inlined_call_operand.vmem [shape: bf16[64,64], index: 5, kind: input, shape index: {}]
  %s6 = inlined_call_operand.hbm [shape: f32[1,64], index: 6, kind: input, shape index: {}]
  %s7 = inlined_call_operand.vmem [shape: bf16[64,128], index: 7, kind: input, shape index: {}]
  %s8 = inlined_call_operand.hbm [shape: f32[1,128], index: 8, kind: input, shape index: {}]
  %s9 = inlined_call_operand.vmem [shape: bf16[128,64], index: 9, kind: input, shape index: {}]
  %s10 = inlined_call_operand.vmem [shape: f32[1,64], index: 10, kind: input, shape index: {}]
  %s11 = inlined_call_operand.hbm [shape: f32[2,64,64], index: 11, kind: output, shape index: {}]
  %s12 = sld [smem:[#allocation0]]
  $region93: #{tpu_custom_call.1} parent=0
    _
  %s14 = ssub.s32 1, %s12
  %s15 = scalar_select 0, %s14, %s12
  $region1: #{tpu_custom_call.1} parent=0
    #allocation4 [shape = 'u8[65536]{0}', space=vmem, size = 0x10000, scoped, tag = 'input window, operand 0']
    #allocation5 [shape = 's32[2]{0}', space=sflag, size = 0x8, scoped, tag = 'scoped memory for tpu_custom_call.1']
    #allocation6 [shape = 's32[2]{0}', space=sflag, size = 0x8, scoped, tag = 'scoped memory for tpu_custom_call.1']
    #allocation7 [shape = 'u8[8192]{0}', space=vmem, size = 0x2000, scoped, tag = 'input window, operand 3, single buffered']
    #allocation8 [shape = 's32[1]{0}', space=sflag, size = 0x4, scoped, tag = 'scoped memory for tpu_custom_call.1']
    #allocation9 [shape = 'u8[512]{0}', space=vmem, size = 0x400, scoped, tag = 'input window, operand 6, single buffered']
    #allocation10 [shape = 'u8[512]{0}', space=vmem, size = 0x400, scoped, tag = 'input window, operand 8, single buffered']
    #allocation11 [shape = 's32[1]{0}', space=sflag, size = 0x4, scoped, tag = 'scoped memory for tpu_custom_call.1']
    #allocation12 [shape = 'u8[65536]{0}', space=vmem, size = 0x10000, scoped, tag = 'output window, operand 0']
    %16 = vsyncpa [#allocation5], 0
    %s17 = scalar_lea.sflag [#allocation5], 1
    %18 = vsyncpa %s17, 0
    %19 = vsyncpa [#allocation8], 0
    %20 = vsyncpa [#allocation11], 0
    %21 = vsyncpa [#allocation6], 0
    %s22 = scalar_lea.sflag [#allocation6], 1
    %23 = vsyncpa %s22, 0
    loop: start=0, step=1, limit=4
    $region2: #{tpu_custom_call.1} parent=1 // loop_pre_header
      _
    $region3: #{tpu_custom_call.1} parent=1 // loop_header
      %s25 = sphi 0, %s29
      %p26 = scmp.ge.s32.totalorder %s25, 4
      %s35 = sphi 0, %s37
      %s38 = sphi 0, %s35
      %s39 = sphi 0, %s38
      %s55 = sphi 0, %s39
      %s59 = sphi 0, %s59
      %s61 = sphi 0, %s59
      %s62 = sphi 0, %s61
      %s76 = sphi 0, %s62
      %s80 = sphi 0, %s80
      %s82 = sphi 0, %s80
      %s83 = sphi 0, %s82
      %s97 = sphi 0, %s83
      %s101 = sphi 0, %s101
      %s103 = sphi 0, %s101
      %s104 = sphi 0, %s103
      %s118 = sphi 0, %s104
      %s122 = sphi 0, %s122
      %s124 = sphi 0, %s122
      %s125 = sphi 0, %s124
      %s139 = sphi 0, %s125
      %s143 = sphi 0, %s143
      %s145 = sphi 0, %s143
      %s146 = sphi 0, %s145
      %s160 = sphi 0, %s146
      %s164 = sphi 0, %s164
      %s166 = sphi 0, %s164
      %s167 = sphi 0, %s166
      %s181 = sphi 0, %s167
      %s185 = sphi 0, %s185
      %s187 = sphi 0, %s185
      %s188 = sphi 0, %s187
      %s202 = sphi 0, %s188
      %s206 = sphi 0, %s206
      %s208 = sphi 0, %s206
      %s209 = sphi 0, %s208
      %s223 = sphi 0, %s209
      %s227 = sphi 0, %s227
      %s229 = sphi 0, %s227
      %s230 = sphi 0, %s229
      %s244 = sphi 0, %s230
      %s248 = sphi 0, %s248
      %s250 = sphi 0, %s248
      %s251 = sphi 0, %s250
      %s265 = sphi 0, %s251
      %s271 = sphi 0, %s273
      %s274 = sphi 0, %s271
      %s275 = sphi 0, %s274
      %s291 = sphi 0, %s275
    $region4: #{tpu_custom_call.1} parent=1 // loop_header_branch
      %28 = sbr.rel (%p26) target = $region8
    $region5: #{tpu_custom_call.1} parent=1 // loop_body
      %s30 = ssub.s32 %s25, 1
      %s31 = ssub.s32 %s25, 2
      %s32 = sadd.s32 %s25, 1
      %s33 = ssub.s32 %s25, %s32
      %p34 = scmp.eq.s32.totalorder %s33, 0
      %s36 = sadd.s32 %s35, 1
      %s37 = scalar_select %p34, %s35, %s36
      %p40 = pneg %p34
      %p41 = scmp.eq.s32.totalorder %s25, 1
      %p42 = por %p40, %p41
      %p43 = scmp.ne.s32.totalorder %s35, %s38
      %p44 = scmp.eq.s32.totalorder %s25, 0
      %p45 = por %p43, %p44
      %p46 = scmp.ne.s32.totalorder %s35, %s38
      %p47 = scmp.eq.s32.totalorder %s30, 1
      %p48 = por %p46, %p47
      %p49 = scmp.ne.s32.totalorder %s38, %s39
      %p50 = scmp.eq.s32.totalorder %s30, 0
      %p51 = por %p49, %p50
      %p52 = scmp.ne.s32.totalorder %s38, %s39
      %p53 = scmp.eq.s32.totalorder %s31, 1
      %p54 = por %p52, %p53
      %p56 = scmp.ne.s32.totalorder %s39, %s55
      %p57 = scmp.eq.s32.totalorder %s31, 0
      %p58 = por %p56, %p57
      %s60 = sadd.s32 %s59, 1
      %p63 = scmp.eq.s32.totalorder %s25, 1
      %p64 = scmp.ne.s32.totalorder %s59, %s61
      %p65 = scmp.eq.s32.totalorder %s25, 0
      %p66 = por %p64, %p65
      %p67 = scmp.ne.s32.totalorder %s59, %s61
      %p68 = scmp.eq.s32.totalorder %s30, 1
      %p69 = por %p67, %p68
      %p70 = scmp.ne.s32.totalorder %s61, %s62
      %p71 = scmp.eq.s32.totalorder %s30, 0
      %p72 = por %p70, %p71
      %p73 = scmp.ne.s32.totalorder %s61, %s62
      %p74 = scmp.eq.s32.totalorder %s31, 1
      %p75 = por %p73, %p74
      %p77 = scmp.ne.s32.totalorder %s62, %s76
      %p78 = scmp.eq.s32.totalorder %s31, 0
      %p79 = por %p77, %p78
      %s81 = sadd.s32 %s80, 1
      %p84 = scmp.eq.s32.totalorder %s25, 1
      %p85 = scmp.ne.s32.totalorder %s80, %s82
      %p86 = scmp.eq.s32.totalorder %s25, 0
      %p87 = por %p85, %p86
      %p88 = scmp.ne.s32.totalorder %s80, %s82
      %p89 = scmp.eq.s32.totalorder %s30, 1
      %p90 = por %p88, %p89
      %p91 = scmp.ne.s32.totalorder %s82, %s83
      %p92 = scmp.eq.s32.totalorder %s30, 0
      %p93 = por %p91, %p92
      %p94 = scmp.ne.s32.totalorder %s82, %s83
      %p95 = scmp.eq.s32.totalorder %s31, 1
      %p96 = por %p94, %p95
      %p98 = scmp.ne.s32.totalorder %s83, %s97
      %p99 = scmp.eq.s32.totalorder %s31, 0
      %p100 = por %p98, %p99
      %s102 = sadd.s32 %s101, 1
      %p105 = scmp.eq.s32.totalorder %s25, 1
      %p106 = scmp.ne.s32.totalorder %s101, %s103
      %p107 = scmp.eq.s32.totalorder %s25, 0
      %p108 = por %p106, %p107
      %p109 = scmp.ne.s32.totalorder %s101, %s103
      %p110 = scmp.eq.s32.totalorder %s30, 1
      %p111 = por %p109, %p110
      %p112 = scmp.ne.s32.totalorder %s103, %s104
      %p113 = scmp.eq.s32.totalorder %s30, 0
      %p114 = por %p112, %p113
      %p115 = scmp.ne.s32.totalorder %s103, %s104
      %p116 = scmp.eq.s32.totalorder %s31, 1
      %p117 = por %p115, %p116
      %p119 = scmp.ne.s32.totalorder %s104, %s118
      %p120 = scmp.eq.s32.totalorder %s31, 0
      %p121 = por %p119, %p120
      %s123 = sadd.s32 %s122, 1
      %p126 = scmp.eq.s32.totalorder %s25, 1
      %p127 = scmp.ne.s32.totalorder %s122, %s124
      %p128 = scmp.eq.s32.totalorder %s25, 0
      %p129 = por %p127, %p128
      %p130 = scmp.ne.s32.totalorder %s122, %s124
      %p131 = scmp.eq.s32.totalorder %s30, 1
      %p132 = por %p130, %p131
      %p133 = scmp.ne.s32.totalorder %s124, %s125
      %p134 = scmp.eq.s32.totalorder %s30, 0
      %p135 = por %p133, %p134
      %p136 = scmp.ne.s32.totalorder %s124, %s125
      %p137 = scmp.eq.s32.totalorder %s31, 1
      %p138 = por %p136, %p137
      %p140 = scmp.ne.s32.totalorder %s125, %s139
      %p141 = scmp.eq.s32.totalorder %s31, 0
      %p142 = por %p140, %p141
      %s144 = sadd.s32 %s143, 1
      %p147 = scmp.eq.s32.totalorder %s25, 1
      %p148 = scmp.ne.s32.totalorder %s143, %s145
      %p149 = scmp.eq.s32.totalorder %s25, 0
      %p150 = por %p148, %p149
      %p151 = scmp.ne.s32.totalorder %s143, %s145
      %p152 = scmp.eq.s32.totalorder %s30, 1
      %p153 = por %p151, %p152
      %p154 = scmp.ne.s32.totalorder %s145, %s146
      %p155 = scmp.eq.s32.totalorder %s30, 0
      %p156 = por %p154, %p155
      %p157 = scmp.ne.s32.totalorder %s145, %s146
      %p158 = scmp.eq.s32.totalorder %s31, 1
      %p159 = por %p157, %p158
      %p161 = scmp.ne.s32.totalorder %s146, %s160
      %p162 = scmp.eq.s32.totalorder %s31, 0
      %p163 = por %p161, %p162
      %s165 = sadd.s32 %s164, 1
      %p168 = scmp.eq.s32.totalorder %s25, 1
      %p169 = scmp.ne.s32.totalorder %s164, %s166
      %p170 = scmp.eq.s32.totalorder %s25, 0
      %p171 = por %p169, %p170
      %p172 = scmp.ne.s32.totalorder %s164, %s166
      %p173 = scmp.eq.s32.totalorder %s30, 1
      %p174 = por %p172, %p173
      %p175 = scmp.ne.s32.totalorder %s166, %s167
      %p176 = scmp.eq.s32.totalorder %s30, 0
      %p177 = por %p175, %p176
      %p178 = scmp.ne.s32.totalorder %s166, %s167
      %p179 = scmp.eq.s32.totalorder %s31, 1
      %p180 = por %p178, %p179
      %p182 = scmp.ne.s32.totalorder %s167, %s181
      %p183 = scmp.eq.s32.totalorder %s31, 0
      %p184 = por %p182, %p183
      %s186 = sadd.s32 %s185, 1
      %p189 = scmp.eq.s32.totalorder %s25, 1
      %p190 = scmp.ne.s32.totalorder %s185, %s187
      %p191 = scmp.eq.s32.totalorder %s25, 0
      %p192 = por %p190, %p191
      %p193 = scmp.ne.s32.totalorder %s185, %s187
      %p194 = scmp.eq.s32.totalorder %s30, 1
      %p195 = por %p193, %p194
      %p196 = scmp.ne.s32.totalorder %s187, %s188
      %p197 = scmp.eq.s32.totalorder %s30, 0
      %p198 = por %p196, %p197
      %p199 = scmp.ne.s32.totalorder %s187, %s188
      %p200 = scmp.eq.s32.totalorder %s31, 1
      %p201 = por %p199, %p200
      %p203 = scmp.ne.s32.totalorder %s188, %s202
      %p204 = scmp.eq.s32.totalorder %s31, 0
      %p205 = por %p203, %p204
      %s207 = sadd.s32 %s206, 1
      %p210 = scmp.eq.s32.totalorder %s25, 1
      %p211 = scmp.ne.s32.totalorder %s206, %s208
      %p212 = scmp.eq.s32.totalorder %s25, 0
      %p213 = por %p211, %p212
      %p214 = scmp.ne.s32.totalorder %s206, %s208
      %p215 = scmp.eq.s32.totalorder %s30, 1
      %p216 = por %p214, %p215
      %p217 = scmp.ne.s32.totalorder %s208, %s209
      %p218 = scmp.eq.s32.totalorder %s30, 0
      %p219 = por %p217, %p218
      %p220 = scmp.ne.s32.totalorder %s208, %s209
      %p221 = scmp.eq.s32.totalorder %s31, 1
      %p222 = por %p220, %p221
      %p224 = scmp.ne.s32.totalorder %s209, %s223
      %p225 = scmp.eq.s32.totalorder %s31, 0
      %p226 = por %p224, %p225
      %s228 = sadd.s32 %s227, 1
      %p231 = scmp.eq.s32.totalorder %s25, 1
      %p232 = scmp.ne.s32.totalorder %s227, %s229
      %p233 = scmp.eq.s32.totalorder %s25, 0
      %p234 = por %p232, %p233
      %p235 = scmp.ne.s32.totalorder %s227, %s229
      %p236 = scmp.eq.s32.totalorder %s30, 1
      %p237 = por %p235, %p236
      %p238 = scmp.ne.s32.totalorder %s229, %s230
      %p239 = scmp.eq.s32.totalorder %s30, 0
      %p240 = por %p238, %p239
      %p241 = scmp.ne.s32.totalorder %s229, %s230
      %p242 = scmp.eq.s32.totalorder %s31, 1
      %p243 = por %p241, %p242
      %p245 = scmp.ne.s32.totalorder %s230, %s244
      %p246 = scmp.eq.s32.totalorder %s31, 0
      %p247 = por %p245, %p246
      %s249 = sadd.s32 %s248, 1
      %p252 = scmp.eq.s32.totalorder %s25, 1
      %p253 = scmp.ne.s32.totalorder %s248, %s250
      %p254 = scmp.eq.s32.totalorder %s25, 0
      %p255 = por %p253, %p254
      %p256 = scmp.ne.s32.totalorder %s248, %s250
      %p257 = scmp.eq.s32.totalorder %s30, 1
      %p258 = por %p256, %p257
      %p259 = scmp.ne.s32.totalorder %s250, %s251
      %p260 = scmp.eq.s32.totalorder %s30, 0
      %p261 = por %p259, %p260
      %p262 = scmp.ne.s32.totalorder %s250, %s251
      %p263 = scmp.eq.s32.totalorder %s31, 1
      %p264 = por %p262, %p263
      %p266 = scmp.ne.s32.totalorder %s251, %s265
      %p267 = scmp.eq.s32.totalorder %s31, 0
      %p268 = por %p266, %p267
      %s269 = ssub.s32 %s25, %s32
      %p270 = scmp.eq.s32.totalorder %s269, 0
      %s272 = sadd.s32 %s271, 1
      %s273 = scalar_select %p270, %s271, %s272
      %p276 = pneg %p270
      %p277 = scmp.eq.s32.totalorder %s25, 1
      %p278 = por %p276, %p277
      %p279 = scmp.ne.s32.totalorder %s271, %s274
      %p280 = scmp.eq.s32.totalorder %s25, 0
      %p281 = por %p279, %p280
      %p282 = scmp.ne.s32.totalorder %s271, %s274
      %p283 = scmp.eq.s32.totalorder %s30, 1
      %p284 = por %p282, %p283
      %p285 = scmp.ne.s32.totalorder %s274, %s275
      %p286 = scmp.eq.s32.totalorder %s30, 0
      %p287 = por %p285, %p286
      %p288 = scmp.ne.s32.totalorder %s274, %s275
      %p289 = scmp.eq.s32.totalorder %s31, 1
      %p290 = por %p288, %p289
      %p292 = scmp.ne.s32.totalorder %s275, %s291
      %p293 = scmp.eq.s32.totalorder %s31, 0
      %p294 = por %p292, %p293
      %p295 = scmp.le.s32.totalorder 1, %s25
      %p296 = scmp.lt.s32.totalorder %s25, 3
      %p297 = pnand %p295, %p296
      %p298 = pneg %p297
      // Predicated region
      $region9: #{tpu_custom_call.1} parent=5 // pred_check
        _
      $region10: #{tpu_custom_call.1} parent=5 // pred_check_branch
        %300 = sbr.rel (%p297) target = $region12
      $region11: #{tpu_custom_call.1} parent=5 // pred_region
        %s301 = ssub.s32 %s25, 1
        // Predicated region
        $region13: #{tpu_custom_call.1} parent=11 // pred_check
          %p302 = pneg %p72
        $region14: #{tpu_custom_call.1} parent=11 // pred_check_branch
          %304 = sbr.rel (%p302) target = $region16
        $region15: #{tpu_custom_call.1} parent=11 // pred_region
          _
        $region16: #{tpu_custom_call.1} parent=11 // pred_fallthru
          _
        // Predicated region
        $region17: #{tpu_custom_call.1} parent=11 // pred_check
          %p305 = pneg %p93
        $region18: #{tpu_custom_call.1} parent=11 // pred_check_branch
          %307 = sbr.rel (%p305) target = $region20
        $region19: #{tpu_custom_call.1} parent=11 // pred_region
          _
        $region20: #{tpu_custom_call.1} parent=11 // pred_fallthru
          _
        // Predicated region
        $region21: #{tpu_custom_call.1} parent=11 // pred_check
          %p308 = pneg %p114
        $region22: #{tpu_custom_call.1} parent=11 // pred_check_branch
          %310 = sbr.rel (%p308) target = $region24
        $region23: #{tpu_custom_call.1} parent=11 // pred_region
          %s312 = ssub.s32 256, 256
          %313 = vsyncadd [#allocation8], %s312
          %s314 = sshll.u32 [#allocation7], 4
          %s315 = int_to_ptr.vmem [resolvable:$true] %s314
          %320 = dma.hbm_to_vmem [thread:$0]  %s3, 256, %s315, [#allocation8], 128, 128, 8
        $region24: #{tpu_custom_call.1} parent=11 // pred_fallthru
          _
        // Predicated region
        $region25: #{tpu_custom_call.1} parent=11 // pred_check
          %p321 = pneg %p135
        $region26: #{tpu_custom_call.1} parent=11 // pred_check_branch
          %323 = sbr.rel (%p321) target = $region28
        $region27: #{tpu_custom_call.1} parent=11 // pred_region
          _
        $region28: #{tpu_custom_call.1} parent=11 // pred_fallthru
          _
        // Predicated region
        $region29: #{tpu_custom_call.1} parent=11 // pred_check
          %p324 = pneg %p156
        $region30: #{tpu_custom_call.1} parent=11 // pred_check_branch
          %326 = sbr.rel (%p324) target = $region32
        $region31: #{tpu_custom_call.1} parent=11 // pred_region
          _
        $region32: #{tpu_custom_call.1} parent=11 // pred_fallthru
          _
        // Predicated region
        $region33: #{tpu_custom_call.1} parent=11 // pred_check
          %p327 = pneg %p177
        $region34: #{tpu_custom_call.1} parent=11 // pred_check_branch
          %329 = sbr.rel (%p327) target = $region36
        $region35: #{tpu_custom_call.1} parent=11 // pred_region
          %s331 = ssub.s32 16, 16
          %332 = vsyncadd [#allocation8], %s331
          %s334 = sshll.u32 [#allocation9], 4
          %s335 = int_to_ptr.vmem [resolvable:$true] %s334
          %337 = dma.hbm_to_vmem [thread:$0]  %s6, 16, %s335, [#allocation8]
        $region36: #{tpu_custom_call.1} parent=11 // pred_fallthru
          _
        // Predicated region
        $region37: #{tpu_custom_call.1} parent=11 // pred_check
          %p338 = pneg %p198
        $region38: #{tpu_custom_call.1} parent=11 // pred_check_branch
          %340 = sbr.rel (%p338) target = $region40
        $region39: #{tpu_custom_call.1} parent=11 // pred_region
          _
        $region40: #{tpu_custom_call.1} parent=11 // pred_fallthru
          _
        // Predicated region
        $region41: #{tpu_custom_call.1} parent=11 // pred_check
          %p341 = pneg %p219
        $region42: #{tpu_custom_call.1} parent=11 // pred_check_branch
          %343 = sbr.rel (%p341) target = $region44
        $region43: #{tpu_custom_call.1} parent=11 // pred_region
          %s345 = ssub.s32 16, 16
          %346 = vsyncadd [#allocation11], %s345
          %s348 = sshll.u32 [#allocation10], 4
          %s349 = int_to_ptr.vmem [resolvable:$true] %s348
          %351 = dma.hbm_to_vmem [thread:$0]  %s8, 16, %s349, [#allocation11]
        $region44: #{tpu_custom_call.1} parent=11 // pred_fallthru
          _
        // Predicated region
        $region45: #{tpu_custom_call.1} parent=11 // pred_check
          %p352 = pneg %p240
        $region46: #{tpu_custom_call.1} parent=11 // pred_check_branch
          %354 = sbr.rel (%p352) target = $region48
        $region47: #{tpu_custom_call.1} parent=11 // pred_region
          _
        $region48: #{tpu_custom_call.1} parent=11 // pred_fallthru
          _
        // Predicated region
        $region49: #{tpu_custom_call.1} parent=11 // pred_check
          %p355 = pneg %p261
        $region50: #{tpu_custom_call.1} parent=11 // pred_check_branch
          %357 = sbr.rel (%p355) target = $region52
        $region51: #{tpu_custom_call.1} parent=11 // pred_region
          _
        $region52: #{tpu_custom_call.1} parent=11 // pred_fallthru
          _
      $region12: #{tpu_custom_call.1} parent=5 // pred_fallthru
        _
      %p358 = scmp.lt.s32.totalorder %s25, 2
      // Predicated region
      $region53: #{tpu_custom_call.1} parent=5 // pred_check
        %p359 = pneg %p358
      $region54: #{tpu_custom_call.1} parent=5 // pred_check_branch
        %361 = sbr.rel (%p359) target = $region56
      $region55: #{tpu_custom_call.1} parent=5 // pred_region
        // Predicated region
        $region57: #{tpu_custom_call.1} parent=55 // pred_check
          %p362 = pneg %p45
        $region58: #{tpu_custom_call.1} parent=55 // pred_check_branch
          %364 = sbr.rel (%p362) target = $region60
        $region59: #{tpu_custom_call.1} parent=55 // pred_region
          %s365 = sand.u32 %s35, 1
          %s366 = scalar_lea.sflag [#allocation5], %s365
          %s367 = sand.u32 %s35, 1
          %s368 = smul.addr %s367, 64
          %s369 = scalar_lea.vmem [#allocation4], %s368
          %s371 = ssub.s32 1024, 1024
          %372 = vsyncadd %s366, %s371
          %s373 = smul.addr %s25, 8
          %s374 = smul.addr %s373, 128
          %s375 = scalar_lea.hbm %s0, %s374
          %s376 = sshll.u32 %s369, 4
          %s377 = int_to_ptr.vmem [resolvable:$true] %s376
          %382 = dma.hbm_to_vmem [thread:$0]  %s375, 1024, %s377, %s366, 128, 128, 8
        $region60: #{tpu_custom_call.1} parent=55 // pred_fallthru
          _
      $region56: #{tpu_custom_call.1} parent=5 // pred_fallthru
        _
      %p383 = scmp.le.s32.totalorder 1, %s25
      %p384 = scmp.lt.s32.totalorder %s25, 3
      %p385 = pnand %p383, %p384
      %p386 = pneg %p385
      // Predicated region
      $region61: #{tpu_custom_call.1} parent=5 // pred_check
        _
      $region62: #{tpu_custom_call.1} parent=5 // pred_check_branch
        %388 = sbr.rel (%p385) target = $region64
      $region63: #{tpu_custom_call.1} parent=5 // pred_region
        %s389 = ssub.s32 %s25, 1
        %s390 = sand.u32 %s38, 1
        %s391 = scalar_lea.sflag [#allocation5], %s390
        %s392 = sand.u32 %s38, 1
        %s393 = smul.addr %s392, 64
        %s394 = scalar_lea.vmem [#allocation4], %s393
        // Predicated region
        $region65: #{tpu_custom_call.1} parent=63 // pred_check
          %p395 = pneg %p51
        $region66: #{tpu_custom_call.1} parent=63 // pred_check_branch
          %397 = sbr.rel (%p395) target = $region68
        $region67: #{tpu_custom_call.1} parent=63 // pred_region
          %398 = dma.done %s391, 1024
        $region68: #{tpu_custom_call.1} parent=63 // pred_fallthru
          _
        // Predicated region
        $region69: #{tpu_custom_call.1} parent=63 // pred_check
          %p399 = pneg %p114
        $region70: #{tpu_custom_call.1} parent=63 // pred_check_branch
          %401 = sbr.rel (%p399) target = $region72
        $region71: #{tpu_custom_call.1} parent=63 // pred_region
          %402 = dma.done [#allocation8], 256
        $region72: #{tpu_custom_call.1} parent=63 // pred_fallthru
          _
        // Predicated region
        $region73: #{tpu_custom_call.1} parent=63 // pred_check
          %p403 = pneg %p177
        $region74: #{tpu_custom_call.1} parent=63 // pred_check_branch
          %405 = sbr.rel (%p403) target = $region76
        $region75: #{tpu_custom_call.1} parent=63 // pred_region
          %406 = dma.done [#allocation8], 16
        $region76: #{tpu_custom_call.1} parent=63 // pred_fallthru
          _
        // Predicated region
        $region77: #{tpu_custom_call.1} parent=63 // pred_check
          %p407 = pneg %p219
        $region78: #{tpu_custom_call.1} parent=63 // pred_check_branch
          %409 = sbr.rel (%p407) target = $region80
        $region79: #{tpu_custom_call.1} parent=63 // pred_region
          %410 = dma.done [#allocation11], 16
        $region80: #{tpu_custom_call.1} parent=63 // pred_fallthru
          _
        %s411 = sand.u32 %s38, 1
        %s412 = scalar_lea.sflag [#allocation5], %s411
        %s413 = sand.u32 %s38, 1
        %s414 = smul.addr %s413, 64
        %s415 = scalar_lea.vmem [#allocation4], %s414
        %p416 = pneg %p51
        %p417 = pneg %p48
        %p418 = pneg %p72
        %p419 = pneg %p69
        %p420 = pneg %p93
        %p421 = pneg %p90
        %p422 = pneg %p114
        %p423 = pneg %p111
        %p424 = pneg %p135
        %p425 = pneg %p132
        %p426 = pneg %p156
        %p427 = pneg %p153
        %p428 = pneg %p177
        %p429 = pneg %p174
        %p430 = pneg %p198
        %p431 = pneg %p195
        %p432 = pneg %p219
        %p433 = pneg %p216
        %p434 = pneg %p240
        %p435 = pneg %p237
        %p436 = pneg %p261
        %p437 = pneg %p258
        %p438 = pneg %p287
        %p439 = pneg %p284
        %s440 = sand.u32 %s274, 1
        %s441 = scalar_lea.sflag [#allocation6], %s440
        %s442 = sand.u32 %s274, 1
        %s443 = smul.addr %s442, 64
        %s444 = scalar_lea.vmem [#allocation12], %s443
        %v446 = vld [vmem:[%s394] sm:$0xff]
        %v447 = vld [vmem:[%s394 + $0x8] sm:$0xff]
        %v448 = vld [vmem:[%s394 + $0x10] sm:$0xff]
        %v449 = vld [vmem:[%s394 + $0x18] sm:$0xff]
        %v450 = vld [vmem:[%s394 + $0x20] sm:$0xff]
        %v451 = vld [vmem:[%s394 + $0x28] sm:$0xff]
        %v452 = vld [vmem:[%s394 + $0x30] sm:$0xff]
        %v453 = vld [vmem:[%s394 + $0x38] sm:$0xff]
        %v454 = vpack.c.bf16 %v447, %v446
        %v455 = vpack.c.bf16 %v449, %v448
        %v456 = vpack.c.bf16 %v451, %v450
        %v457 = vpack.c.bf16 %v453, %v452
        %v458 = vld [vmem:[%s1] sm:$0xf]
        %v459 = vld [vmem:[%s1 + $0x4] sm:$0xf]
        %v460 = vld [vmem:[%s1 + $0x8] sm:$0xf]
        %v461 = vld [vmem:[%s1 + $0xc] sm:$0xf]
        %v462 = vld [vmem:[%s1 + $0x10] sm:$0xf]
        %v463 = vld [vmem:[%s1 + $0x14] sm:$0xf]
        %v464 = vld [vmem:[%s1 + $0x18] sm:$0xf]
        %v465 = vld [vmem:[%s1 + $0x1c] sm:$0xf]
        %v466 = vld [vmem:[%s2] sm:$0x1]
        %v468 = vlaneseq
        %v469 = vshrl.u32 %v468, 7
        %v470 = vsub.s32 0, %v469
        %v471 = vrot.slane %v466, %v470
        %v481 = vunpack.c.l.b16 %v458
        %v482 = vunpack.c.l.b16 %v459
        %v483 = vunpack.c.l.b16 %v460
        %v484 = vunpack.c.l.b16 %v461
        %v485 = vunpack.c.l.b16 %v462
        %v486 = vunpack.c.l.b16 %v463
        %v487 = vunpack.c.l.b16 %v464
        %v488 = vunpack.c.l.b16 %v465
        %v489 = vpack.c.b16 %v482, %v481
        %v490 = vpack.c.b16 %v484, %v483
        %v491 = vpack.c.b16 %v486, %v485
        %v492 = vpack.c.b16 %v488, %v487
        %vm497 = vcmask 523264
        %v499 = vsel %vm497, %v454, 0
        %v502 = vsel %vm497, %v455, 0
        %v505 = vsel %vm497, %v456, 0
        %v508 = vsel %vm497, %v457, 0
        %510 = vmatprep.subr.bf16.mxu0 0
        %511 = vmatpush1.bf16.msra.mxu0 %v489
        %512 = vmatprep.subr.bf16.mxu0 0
        %513 = vmatpush1.bf16.msra.mxu0 %v490
        %514 = vmatprep.subr.bf16.mxu0 0
        %515 = vmatpush1.bf16.msra.mxu0 %v491
        %516 = vmatprep.subr.bf16.mxu0 0
        %517 = vmatpush1.bf16.msra.mxu0 %v492
        %518 = vmatprep.subr.bf16.mxu0 0
        %519 = vmatpush1.bf16.msra.mxu0 0
        %520 = vmatprep.subr.bf16.mxu0 0
        %521 = vmatpush1.bf16.msra.mxu0 0
        %522 = vmatprep.subr.bf16.mxu0 0
        %523 = vmatpush1.bf16.msra.mxu0 0
        %524 = vmatprep.subr.bf16.mxu0 0
        %525 = vmatpush1.bf16.msra.mxu0 0
        %526 = vmatprep.subr.bf16.mxu0 0
        %527 = vmatpush1.bf16.msra.mxu0 0
        %528 = vmatprep.subr.bf16.mxu0 0
        %529 = vmatpush1.bf16.msra.mxu0 0
        %530 = vmatprep.subr.bf16.mxu0 0
        %531 = vmatpush1.bf16.msra.mxu0 0
        %532 = vmatprep.subr.bf16.mxu0 0
        %533 = vmatpush1.bf16.msra.mxu0 0
        %534 = vmatprep.subr.bf16.mxu0 0
        %535 = vmatpush1.bf16.msra.mxu0 0
        %536 = vmatprep.subr.bf16.mxu0 0
        %537 = vmatpush1.bf16.msra.mxu0 0
        %538 = vmatprep.subr.bf16.mxu0 0
        %539 = vmatpush1.bf16.msra.mxu0 0
        %540 = vmatprep.subr.bf16.mxu0 0
        %541 = vmatpush1.bf16.msra.mxu0 0
        %542 = vmatprep.mubr.bf16.mxu0 0
        %543 = vmatmul.mubr.bf16.gmra.mrb[0].mxu0 %v499
        %v544 = vpop.f32.mrb[0].mxu0
        %v545 = vadd.f32 %v471, %v544
        %v546 = vpop.f32.mrb[0].mxu0
        %v547 = vpop.f32.mrb[0].mxu0
        %v548 = vadd.f32 %v471, %v547
        %v549 = vpop.f32.mrb[0].mxu0
        %550 = vmatprep.mubr.bf16.mxu0 0
        %551 = vmatmul.mubr.bf16.gmra.mrb[0].mxu0 %v502
        %v552 = vpop.f32.mrb[0].mxu0
        %v553 = vadd.f32 %v471, %v552
        %v554 = vpop.f32.mrb[0].mxu0
        %v555 = vpop.f32.mrb[0].mxu0
        %v556 = vadd.f32 %v471, %v555
        %v557 = vpop.f32.mrb[0].mxu0
        %558 = vmatprep.mubr.bf16.mxu0 0
        %559 = vmatmul.mubr.bf16.gmra.mrb[0].mxu0 %v505
        %v560 = vpop.f32.mrb[0].mxu0
        %v561 = vadd.f32 %v471, %v560
        %v562 = vpop.f32.mrb[0].mxu0
        %v563 = vpop.f32.mrb[0].mxu0
        %v564 = vadd.f32 %v471, %v563
        %v565 = vpop.f32.mrb[0].mxu0
        %566 = vmatprep.mubr.bf16.mxu0 0
        %567 = vmatmul.mubr.bf16.gmra.mrb[0].mxu0 %v508
        %v568 = vpop.f32.mrb[0].mxu0
        %v569 = vadd.f32 %v471, %v568
        %v570 = vpop.f32.mrb[0].mxu0
        %v571 = vpop.f32.mrb[0].mxu0
        %v572 = vadd.f32 %v471, %v571
        %v573 = vpop.f32.mrb[0].mxu0
        %574 = vdwg.mxu0
        %v575 = vpack.c.bf16 %v548, %v545
        %v576 = vpack.c.bf16 %v556, %v553
        %v577 = vpack.c.bf16 %v564, %v561
        %v578 = vpack.c.bf16 %v572, %v569
        %583 = vrot.lane.b32.xlu0 %v575, 96
        %v584 = vpop.permute.xlu0 %583
        %585 = vrot.lane.b32.xlu0 %v576, 96
        %v586 = vpop.permute.xlu0 %585
        %587 = vrot.lane.b32.xlu0 %v577, 96
        %v588 = vpop.permute.xlu0 %587
        %589 = vrot.lane.b32.xlu0 %v578, 96
        %v590 = vpop.permute.xlu0 %589
        %vm591 = vcmask 130048
        %v593 = vsel %vm591, %v575, 0
        %v596 = vsel %vm591, %v576, 0
        %v599 = vsel %vm591, %v577, 0
        %v602 = vsel %vm591, %v578, 0
        %v605 = vsel %vm591, %v584, 0
        %v608 = vsel %vm591, %v586, 0
        %v611 = vsel %vm591, %v588, 0
        %v614 = vsel %vm591, %v590, 0
        %616 = vmatprep.subr.bf16.mxu0 0
        %617 = vmatpush1.bf16.xpose.msra.mxu0 %v605
        %618 = vmatprep.subr.bf16.mxu0 0
        %619 = vmatpush1.bf16.xpose.msra.mxu0 %v608
        %620 = vmatprep.subr.bf16.mxu0 0
        %621 = vmatpush1.bf16.xpose.msra.mxu0 %v611
        %622 = vmatprep.subr.bf16.mxu0 0
        %623 = vmatpush1.bf16.xpose.msra.mxu0 %v614
        %624 = vmatprep.subr.bf16.mxu0 0
        %625 = vmatpush1.bf16.xpose.msra.mxu0 0
        %626 = vmatprep.subr.bf16.mxu0 0
        %627 = vmatpush1.bf16.xpose.msra.mxu0 0
        %628 = vmatprep.subr.bf16.mxu0 0
        %629 = vmatpush1.bf16.xpose.msra.mxu0 0
        %630 = vmatprep.subr.bf16.mxu0 0
        %631 = vmatpush1.bf16.xpose.msra.mxu0 0
        %632 = vmatprep.subr.bf16.mxu0 0
        %633 = vmatpush1.bf16.xpose.msra.mxu0 0
        %634 = vmatprep.subr.bf16.mxu0 0
        %635 = vmatpush1.bf16.xpose.msra.mxu0 0
        %636 = vmatprep.subr.bf16.mxu0 0
        %637 = vmatpush1.bf16.xpose.msra.mxu0 0
        %638 = vmatprep.subr.bf16.mxu0 0
        %639 = vmatpush1.bf16.xpose.msra.mxu0 0
        %640 = vmatprep.subr.bf16.mxu0 0
        %641 = vmatpush1.bf16.xpose.msra.mxu0 0
        %642 = vmatprep.subr.bf16.mxu0 0
        %643 = vmatpush1.bf16.xpose.msra.mxu0 0
        %644 = vmatprep.subr.bf16.mxu0 0
        %645 = vmatpush1.bf16.xpose.msra.mxu0 0
        %646 = vmatprep.subr.bf16.mxu0 0
        %647 = vmatpush1.bf16.xpose.msra.mxu0 0
        %648 = vmatprep.mubr.bf16.mxu0 0
        %649 = vmatmul.mubr.bf16.gmra.mrb[0].mxu0 %v593
        %v650 = vpop.f32.mrb[0].mxu0
        %v651 = vadd.f32 0.0, %v650
        %v652 = vpop.f32.mrb[0].mxu0
        %v653 = vpop.f32.mrb[0].mxu0
        %v654 = vadd.f32 0.0, %v653
        %v655 = vpop.f32.mrb[0].mxu0
        %656 = vmatprep.mubr.bf16.mxu0 0
        %657 = vmatmul.mubr.bf16.gmra.mrb[0].mxu0 %v596
        %v658 = vpop.f32.mrb[0].mxu0
        %v659 = vadd.f32 0.0, %v658
        %v660 = vpop.f32.mrb[0].mxu0
        %v661 = vpop.f32.mrb[0].mxu0
        %v662 = vadd.f32 0.0, %v661
        %v663 = vpop.f32.mrb[0].mxu0
        %664 = vmatprep.mubr.bf16.mxu0 0
        %665 = vmatmul.mubr.bf16.gmra.mrb[0].mxu0 %v599
        %v666 = vpop.f32.mrb[0].mxu0
        %v667 = vadd.f32 0.0, %v666
        %v668 = vpop.f32.mrb[0].mxu0
        %v669 = vpop.f32.mrb[0].mxu0
        %v670 = vadd.f32 0.0, %v669
        %v671 = vpop.f32.mrb[0].mxu0
        %672 = vmatprep.mubr.bf16.mxu0 0
        %673 = vmatmul.mubr.bf16.gmra.mrb[0].mxu0 %v602
        %v674 = vpop.f32.mrb[0].mxu0
        %v675 = vadd.f32 0.0, %v674
        %v676 = vpop.f32.mrb[0].mxu0
        %v677 = vpop.f32.mrb[0].mxu0
        %v678 = vadd.f32 0.0, %v677
        %v679 = vpop.f32.mrb[0].mxu0
        %680 = vdwg.mxu0
        %v681 = vsel %vm497, %v651, -inf
        %682 = vmax.xlane.f32.xlu0 %v681
        %v683 = vpop.xlane.xlu0 %682
        %v684 = vsel %vm497, %v654, -inf
        %685 = vmax.xlane.f32.xlu0 %v684
        %v686 = vpop.xlane.xlu0 %685
        %v687 = vsel %vm497, %v659, -inf
        %688 = vmax.xlane.f32.xlu0 %v687
        %v689 = vpop.xlane.xlu0 %688
        %v690 = vsel %vm497, %v662, -inf
        %691 = vmax.xlane.f32.xlu0 %v690
        %v692 = vpop.xlane.xlu0 %691
        %v693 = vsel %vm497, %v667, -inf
        %694 = vmax.xlane.f32.xlu0 %v693
        %v695 = vpop.xlane.xlu0 %694
        %v696 = vsel %vm497, %v670, -inf
        %697 = vmax.xlane.f32.xlu0 %v696
        %v698 = vpop.xlane.xlu0 %697
        %v699 = vsel %vm497, %v675, -inf
        %700 = vmax.xlane.f32.xlu0 %v699
        %v701 = vpop.xlane.xlu0 %700
        %v702 = vsel %vm497, %v678, -inf
        %703 = vmax.xlane.f32.xlu0 %v702
        %v704 = vpop.xlane.xlu0 %703
        %v705 = vsub.f32 %v651, %v683
        %v706 = vsub.f32 %v654, %v686
        %v707 = vsub.f32 %v659, %v689
        %v708 = vsub.f32 %v662, %v692
        %v709 = vsub.f32 %v667, %v695
        %v710 = vsub.f32 %v670, %v698
        %v711 = vsub.f32 %v675, %v701
        %v712 = vsub.f32 %v678, %v704
        %v713 = vmul.f32 %v705, 1.442695
        %v714 = vpow.pop %v713
        %v715 = vmul.f32 %v706, 1.442695
        %v716 = vpow.pop %v715
        %v717 = vmul.f32 %v707, 1.442695
        %v718 = vpow.pop %v717
        %v719 = vmul.f32 %v708, 1.442695
        %v720 = vpow.pop %v719
        %v721 = vmul.f32 %v709, 1.442695
        %v722 = vpow.pop %v721
        %v723 = vmul.f32 %v710, 1.442695
        %v724 = vpow.pop %v723
        %v725 = vmul.f32 %v711, 1.442695
        %v726 = vpow.pop %v725
        %v727 = vmul.f32 %v712, 1.442695
        %v728 = vpow.pop %v727
        %v729 = vsel %vm497, %v714, 0.0
        %730 = vadd.xlane.f32.xlu0 %v729
        %v731 = vpop.xlane.xlu0 %730
        %v732 = vsel %vm497, %v716, 0.0
        %733 = vadd.xlane.f32.xlu0 %v732
        %v734 = vpop.xlane.xlu0 %733
        %v735 = vsel %vm497, %v718, 0.0
        %736 = vadd.xlane.f32.xlu0 %v735
        %v737 = vpop.xlane.xlu0 %736
        %v738 = vsel %vm497, %v720, 0.0
        %739 = vadd.xlane.f32.xlu0 %v738
        %v740 = vpop.xlane.xlu0 %739
        %v741 = vsel %vm497, %v722, 0.0
        %742 = vadd.xlane.f32.xlu0 %v741
        %v743 = vpop.xlane.xlu0 %742
        %v744 = vsel %vm497, %v724, 0.0
        %745 = vadd.xlane.f32.xlu0 %v744
        %v746 = vpop.xlane.xlu0 %745
        %v747 = vsel %vm497, %v726, 0.0
        %748 = vadd.xlane.f32.xlu0 %v747
        %v749 = vpop.xlane.xlu0 %748
        %v750 = vsel %vm497, %v728, 0.0
        %751 = vadd.xlane.f32.xlu0 %v750
        %v752 = vpop.xlane.xlu0 %751
        %v753 = vrcp.pop %v731
        %v754 = vrcp.pop %v734
        %v755 = vrcp.pop %v737
        %v756 = vrcp.pop %v740
        %v757 = vrcp.pop %v743
        %v758 = vrcp.pop %v746
        %v759 = vrcp.pop %v749
        %v760 = vrcp.pop %v752
        %v761 = vmul.f32 %v714, %v753
        %v762 = vmul.f32 %v716, %v754
        %v763 = vmul.f32 %v718, %v755
        %v764 = vmul.f32 %v720, %v756
        %v765 = vmul.f32 %v722, %v757
        %v766 = vmul.f32 %v724, %v758
        %v767 = vmul.f32 %v726, %v759
        %v768 = vmul.f32 %v728, %v760
        %v769 = vpack.c.bf16 %v762, %v761
        %v770 = vpack.c.bf16 %v764, %v763
        %v771 = vpack.c.bf16 %v766, %v765
        %v772 = vpack.c.bf16 %v768, %v767
        %773 = vrot.lane.b32.xlu0 %v575, 64
        %v774 = vpop.permute.xlu0 %773
        %775 = vrot.lane.b32.xlu0 %v576, 64
        %v776 = vpop.permute.xlu0 %775
        %777 = vrot.lane.b32.xlu0 %v577, 64
        %v778 = vpop.permute.xlu0 %777
        %779 = vrot.lane.b32.xlu0 %v578, 64
        %v780 = vpop.permute.xlu0 %779
        %v786 = vsel %vm497, %v769, 0
        %v789 = vsel %vm497, %v770, 0
        %v792 = vsel %vm497, %v771, 0
        %v795 = vsel %vm497, %v772, 0
        %797 = vmatprep.subr.bf16.mxu0 0
        %798 = vmatpush1.bf16.msra.mxu0 %v774
        %799 = vmatprep.subr.bf16.mxu0 0
        %800 = vmatpush1.bf16.msra.mxu0 %v776
        %801 = vmatprep.subr.bf16.mxu0 0
        %802 = vmatpush1.bf16.msra.mxu0 %v778
        %803 = vmatprep.subr.bf16.mxu0 0
        %804 = vmatpush1.bf16.msra.mxu0 %v780
        %805 = vmatprep.subr.bf16.mxu0 0
        %806 = vmatpush1.bf16.msra.mxu0 0
        %807 = vmatprep.subr.bf16.mxu0 0
        %808 = vmatpush1.bf16.msra.mxu0 0
        %809 = vmatprep.subr.bf16.mxu0 0
        %810 = vmatpush1.bf16.msra.mxu0 0
        %811 = vmatprep.subr.bf16.mxu0 0
        %812 = vmatpush1.bf16.msra.mxu0 0
        %813 = vmatprep.subr.bf16.mxu0 0
        %814 = vmatpush1.bf16.msra.mxu0 0
        %815 = vmatprep.subr.bf16.mxu0 0
        %816 = vmatpush1.bf16.msra.mxu0 0
        %817 = vmatprep.subr.bf16.mxu0 0
        %818 = vmatpush1.bf16.msra.mxu0 0
        %819 = vmatprep.subr.bf16.mxu0 0
        %820 = vmatpush1.bf16.msra.mxu0 0
        %821 = vmatprep.subr.bf16.mxu0 0
        %822 = vmatpush1.bf16.msra.mxu0 0
        %823 = vmatprep.subr.bf16.mxu0 0
        %824 = vmatpush1.bf16.msra.mxu0 0
        %825 = vmatprep.subr.bf16.mxu0 0
        %826 = vmatpush1.bf16.msra.mxu0 0
        %827 = vmatprep.subr.bf16.mxu0 0
        %828 = vmatpush1.bf16.msra.mxu0 0
        %829 = vmatprep.mubr.bf16.mxu0 0
        %830 = vmatmul.mubr.bf16.gmra.mrb[0].mxu0 %v786
        %v831 = vpop.f32.mrb[0].mxu0
        %v832 = vadd.f32 0.0, %v831
        %v833 = vpop.f32.mrb[0].mxu0
        %v834 = vpop.f32.mrb[0].mxu0
        %v835 = vadd.f32 0.0, %v834
        %v836 = vpop.f32.mrb[0].mxu0
        %837 = vmatprep.mubr.bf16.mxu0 0
        %838 = vmatmul.mubr.bf16.gmra.mrb[0].mxu0 %v789
        %v839 = vpop.f32.mrb[0].mxu0
        %v840 = vadd.f32 0.0, %v839
        %v841 = vpop.f32.mrb[0].mxu0
        %v842 = vpop.f32.mrb[0].mxu0
        %v843 = vadd.f32 0.0, %v842
        %v844 = vpop.f32.mrb[0].mxu0
        %845 = vmatprep.mubr.bf16.mxu0 0
        %846 = vmatmul.mubr.bf16.gmra.mrb[0].mxu0 %v792
        %v847 = vpop.f32.mrb[0].mxu0
        %v848 = vadd.f32 0.0, %v847
        %v849 = vpop.f32.mrb[0].mxu0
        %v850 = vpop.f32.mrb[0].mxu0
        %v851 = vadd.f32 0.0, %v850
        %v852 = vpop.f32.mrb[0].mxu0
        %853 = vmatprep.mubr.bf16.mxu0 0
        %854 = vmatmul.mubr.bf16.gmra.mrb[0].mxu0 %v795
        %v855 = vpop.f32.mrb[0].mxu0
        %v856 = vadd.f32 0.0, %v855
        %v857 = vpop.f32.mrb[0].mxu0
        %v858 = vpop.f32.mrb[0].mxu0
        %v859 = vadd.f32 0.0, %v858
        %v860 = vpop.f32.mrb[0].mxu0
        %861 = vdwg.mxu0
        %vm862 = vcmask 261120
        %863 = vst.msk [vmem:[#allocation2] sm:$0xff] %vm862, %v832
        %864 = vst.msk [vmem:[#allocation2 + $0x8] sm:$0xff] %vm862, %v835
        %865 = vst.msk [vmem:[#allocation2 + $0x10] sm:$0xff] %vm862, %v840
        %866 = vst.msk [vmem:[#allocation2 + $0x18] sm:$0xff] %vm862, %v843
        %867 = vst.msk [vmem:[#allocation2 + $0x20] sm:$0xff] %vm862, %v848
        %868 = vst.msk [vmem:[#allocation2 + $0x28] sm:$0xff] %vm862, %v851
        %869 = vst.msk [vmem:[#allocation2 + $0x30] sm:$0xff] %vm862, %v856
        %870 = vst.msk [vmem:[#allocation2 + $0x38] sm:$0xff] %vm862, %v859
        %871 = vrot.lane.b32.xlu0 %v575, 112
        %v872 = vpop.permute.xlu0 %871
        %873 = vrot.lane.b32.xlu0 %v576, 112
        %v874 = vpop.permute.xlu0 %873
        %875 = vrot.lane.b32.xlu0 %v577, 112
        %v876 = vpop.permute.xlu0 %875
        %877 = vrot.lane.b32.xlu0 %v578, 112
        %v878 = vpop.permute.xlu0 %877
        %879 = vrot.lane.b32.xlu0 %v575, 80
        %v880 = vpop.permute.xlu0 %879
        %881 = vrot.lane.b32.xlu0 %v576, 80
        %v882 = vpop.permute.xlu0 %881
        %883 = vrot.lane.b32.xlu0 %v577, 80
        %v884 = vpop.permute.xlu0 %883
        %885 = vrot.lane.b32.xlu0 %v578, 80
        %v886 = vpop.permute.xlu0 %885
        %v888 = vsel %vm591, %v872, 0
        %v891 = vsel %vm591, %v874, 0
        %v894 = vsel %vm591, %v876, 0
        %v897 = vsel %vm591, %v878, 0
        %v900 = vsel %vm591, %v880, 0
        %v903 = vsel %vm591, %v882, 0
        %v906 = vsel %vm591, %v884, 0
        %v909 = vsel %vm591, %v886, 0
        %911 = vmatprep.subr.bf16.mxu0 0
        %912 = vmatpush1.bf16.xpose.msra.mxu0 %v900
        %913 = vmatprep.subr.bf16.mxu0 0
        %914 = vmatpush1.bf16.xpose.msra.mxu0 %v903
        %915 = vmatprep.subr.bf16.mxu0 0
        %916 = vmatpush1.bf16.xpose.msra.mxu0 %v906
        %917 = vmatprep.subr.bf16.mxu0 0
        %918 = vmatpush1.bf16.xpose.msra.mxu0 %v909
        %919 = vmatprep.subr.bf16.mxu0 0
        %920 = vmatpush1.bf16.xpose.msra.mxu0 0
        %921 = vmatprep.subr.bf16.mxu0 0
        %922 = vmatpush1.bf16.xpose.msra.mxu0 0
        %923 = vmatprep.subr.bf16.mxu0 0
        %924 = vmatpush1.bf16.xpose.msra.mxu0 0
        %925 = vmatprep.subr.bf16.mxu0 0
        %926 = vmatpush1.bf16.xpose.msra.mxu0 0
        %927 = vmatprep.subr.bf16.mxu0 0
        %928 = vmatpush1.bf16.xpose.msra.mxu0 0
        %929 = vmatprep.subr.bf16.mxu0 0
        %930 = vmatpush1.bf16.xpose.msra.mxu0 0
        %931 = vmatprep.subr.bf16.mxu0 0
        %932 = vmatpush1.bf16.xpose.msra.mxu0 0
        %933 = vmatprep.subr.bf16.mxu0 0
        %934 = vmatpush1.bf16.xpose.msra.mxu0 0
        %935 = vmatprep.subr.bf16.mxu0 0
        %936 = vmatpush1.bf16.xpose.msra.mxu0 0
        %937 = vmatprep.subr.bf16.mxu0 0
        %938 = vmatpush1.bf16.xpose.msra.mxu0 0
        %939 = vmatprep.subr.bf16.mxu0 0
        %940 = vmatpush1.bf16.xpose.msra.mxu0 0
        %941 = vmatprep.subr.bf16.mxu0 0
        %942 = vmatpush1.bf16.xpose.msra.mxu0 0
        %943 = vmatprep.mubr.bf16.mxu0 0
        %944 = vmatmul.mubr.bf16.gmra.mrb[0].mxu0 %v888
        %v945 = vpop.f32.mrb[0].mxu0
        %v946 = vadd.f32 0.0, %v945
        %v947 = vpop.f32.mrb[0].mxu0
        %v948 = vpop.f32.mrb[0].mxu0
        %v949 = vadd.f32 0.0, %v948
        %v950 = vpop.f32.mrb[0].mxu0
        %951 = vmatprep.mubr.bf16.mxu0 0
        %952 = vmatmul.mubr.bf16.gmra.mrb[0].mxu0 %v891
        %v953 = vpop.f32.mrb[0].mxu0
        %v954 = vadd.f32 0.0, %v953
        %v955 = vpop.f32.mrb[0].mxu0
        %v956 = vpop.f32.mrb[0].mxu0
        %v957 = vadd.f32 0.0, %v956
        %v958 = vpop.f32.mrb[0].mxu0
        %959 = vmatprep.mubr.bf16.mxu0 0
        %960 = vmatmul.mubr.bf16.gmra.mrb[0].mxu0 %v894
        %v961 = vpop.f32.mrb[0].mxu0
        %v962 = vadd.f32 0.0, %v961
        %v963 = vpop.f32.mrb[0].mxu0
        %v964 = vpop.f32.mrb[0].mxu0
        %v965 = vadd.f32 0.0, %v964
        %v966 = vpop.f32.mrb[0].mxu0
        %967 = vmatprep.mubr.bf16.mxu0 0
        %968 = vmatmul.mubr.bf16.gmra.mrb[0].mxu0 %v897
        %v969 = vpop.f32.mrb[0].mxu0
        %v970 = vadd.f32 0.0, %v969
        %v971 = vpop.f32.mrb[0].mxu0
        %v972 = vpop.f32.mrb[0].mxu0
        %v973 = vadd.f32 0.0, %v972
        %v974 = vpop.f32.mrb[0].mxu0
        %975 = vdwg.mxu0
        %v976 = vsel %vm497, %v946, -inf
        %977 = vmax.xlane.f32.xlu0 %v976
        %v978 = vpop.xlane.xlu0 %977
        %v979 = vsel %vm497, %v949, -inf
        %980 = vmax.xlane.f32.xlu0 %v979
        %v981 = vpop.xlane.xlu0 %980
        %v982 = vsel %vm497, %v954, -inf
        %983 = vmax.xlane.f32.xlu0 %v982
        %v984 = vpop.xlane.xlu0 %983
        %v985 = vsel %vm497, %v957, -inf
        %986 = vmax.xlane.f32.xlu0 %v985
        %v987 = vpop.xlane.xlu0 %986
        %v988 = vsel %vm497, %v962, -inf
        %989 = vmax.xlane.f32.xlu0 %v988
        %v990 = vpop.xlane.xlu0 %989
        %v991 = vsel %vm497, %v965, -inf
        %992 = vmax.xlane.f32.xlu0 %v991
        %v993 = vpop.xlane.xlu0 %992
        %v994 = vsel %vm497, %v970, -inf
        %995 = vmax.xlane.f32.xlu0 %v994
        %v996 = vpop.xlane.xlu0 %995
        %v997 = vsel %vm497, %v973, -inf
        %998 = vmax.xlane.f32.xlu0 %v997
        %v999 = vpop.xlane.xlu0 %998
        %v1000 = vsub.f32 %v946, %v978
        %v1001 = vsub.f32 %v949, %v981
        %v1002 = vsub.f32 %v954, %v984
        %v1003 = vsub.f32 %v957, %v987
        %v1004 = vsub.f32 %v962, %v990
        %v1005 = vsub.f32 %v965, %v993
        %v1006 = vsub.f32 %v970, %v996
        %v1007 = vsub.f32 %v973, %v999
        %v1008 = vmul.f32 %v1000, 1.442695
        %v1009 = vpow.pop %v1008
        %v1010 = vmul.f32 %v1001, 1.442695
        %v1011 = vpow.pop %v1010
        %v1012 = vmul.f32 %v1002, 1.442695
        %v1013 = vpow.pop %v1012
        %v1014 = vmul.f32 %v1003, 1.442695
        %v1015 = vpow.pop %v1014
        %v1016 = vmul.f32 %v1004, 1.442695
        %v1017 = vpow.pop %v1016
        %v1018 = vmul.f32 %v1005, 1.442695
        %v1019 = vpow.pop %v1018
        %v1020 = vmul.f32 %v1006, 1.442695
        %v1021 = vpow.pop %v1020
        %v1022 = vmul.f32 %v1007, 1.442695
        %v1023 = vpow.pop %v1022
        %v1024 = vsel %vm497, %v1009, 0.0
        %1025 = vadd.xlane.f32.xlu0 %v1024
        %v1026 = vpop.xlane.xlu0 %1025
        %v1027 = vsel %vm497, %v1011, 0.0
        %1028 = vadd.xlane.f32.xlu0 %v1027
        %v1029 = vpop.xlane.xlu0 %1028
        %v1030 = vsel %vm497, %v1013, 0.0
        %1031 = vadd.xlane.f32.xlu0 %v1030
        %v1032 = vpop.xlane.xlu0 %1031
        %v1033 = vsel %vm497, %v1015, 0.0
        %1034 = vadd.xlane.f32.xlu0 %v1033
        %v1035 = vpop.xlane.xlu0 %1034
        %v1036 = vsel %vm497, %v1017, 0.0
        %1037 = vadd.xlane.f32.xlu0 %v1036
        %v1038 = vpop.xlane.xlu0 %1037
        %v1039 = vsel %vm497, %v1019, 0.0
        %1040 = vadd.xlane.f32.xlu0 %v1039
        %v1041 = vpop.xlane.xlu0 %1040
        %v1042 = vsel %vm497, %v1021, 0.0
        %1043 = vadd.xlane.f32.xlu0 %v1042
        %v1044 = vpop.xlane.xlu0 %1043
        %v1045 = vsel %vm497, %v1023, 0.0
        %1046 = vadd.xlane.f32.xlu0 %v1045
        %v1047 = vpop.xlane.xlu0 %1046
        %v1048 = vrcp.pop %v1026
        %v1049 = vrcp.pop %v1029
        %v1050 = vrcp.pop %v1032
        %v1051 = vrcp.pop %v1035
        %v1052 = vrcp.pop %v1038
        %v1053 = vrcp.pop %v1041
        %v1054 = vrcp.pop %v1044
        %v1055 = vrcp.pop %v1047
        %v1056 = vmul.f32 %v1009, %v1048
        %v1057 = vmul.f32 %v1011, %v1049
        %v1058 = vmul.f32 %v1013, %v1050
        %v1059 = vmul.f32 %v1015, %v1051
        %v1060 = vmul.f32 %v1017, %v1052
        %v1061 = vmul.f32 %v1019, %v1053
        %v1062 = vmul.f32 %v1021, %v1054
        %v1063 = vmul.f32 %v1023, %v1055
        %v1064 = vpack.c.bf16 %v1057, %v1056
        %v1065 = vpack.c.bf16 %v1059, %v1058
        %v1066 = vpack.c.bf16 %v1061, %v1060
        %v1067 = vpack.c.bf16 %v1063, %v1062
        %1068 = vrot.lane.b32.xlu0 %v575, 32
        %v1069 = vpop.permute.xlu0 %1068
        %1070 = vrot.lane.b32.xlu0 %v576, 32
        %v1071 = vpop.permute.xlu0 %1070
        %1072 = vrot.lane.b32.xlu0 %v577, 32
        %v1073 = vpop.permute.xlu0 %1072
        %1074 = vrot.lane.b32.xlu0 %v578, 32
        %v1075 = vpop.permute.xlu0 %1074
        %v1081 = vsel %vm497, %v1064, 0
        %v1084 = vsel %vm497, %v1065, 0
        %v1087 = vsel %vm497, %v1066, 0
        %v1090 = vsel %vm497, %v1067, 0
        %1092 = vmatprep.subr.bf16.mxu0 0
        %1093 = vmatpush1.bf16.msra.mxu0 %v1069
        %1094 = vmatprep.subr.bf16.mxu0 0
        %1095 = vmatpush1.bf16.msra.mxu0 %v1071
        %1096 = vmatprep.subr.bf16.mxu0 0
        %1097 = vmatpush1.bf16.msra.mxu0 %v1073
        %1098 = vmatprep.subr.bf16.mxu0 0
        %1099 = vmatpush1.bf16.msra.mxu0 %v1075
        %1100 = vmatprep.subr.bf16.mxu0 0
        %1101 = vmatpush1.bf16.msra.mxu0 0
        %1102 = vmatprep.subr.bf16.mxu0 0
        %1103 = vmatpush1.bf16.msra.mxu0 0
        %1104 = vmatprep.subr.bf16.mxu0 0
        %1105 = vmatpush1.bf16.msra.mxu0 0
        %1106 = vmatprep.subr.bf16.mxu0 0
        %1107 = vmatpush1.bf16.msra.mxu0 0
        %1108 = vmatprep.subr.bf16.mxu0 0
        %1109 = vmatpush1.bf16.msra.mxu0 0
        %1110 = vmatprep.subr.bf16.mxu0 0
        %1111 = vmatpush1.bf16.msra.mxu0 0
        %1112 = vmatprep.subr.bf16.mxu0 0
        %1113 = vmatpush1.bf16.msra.mxu0 0
        %1114 = vmatprep.subr.bf16.mxu0 0
        %1115 = vmatpush1.bf16.msra.mxu0 0
        %1116 = vmatprep.subr.bf16.mxu0 0
        %1117 = vmatpush1.bf16.msra.mxu0 0
        %1118 = vmatprep.subr.bf16.mxu0 0
        %1119 = vmatpush1.bf16.msra.mxu0 0
        %1120 = vmatprep.subr.bf16.mxu0 0
        %1121 = vmatpush1.bf16.msra.mxu0 0
        %1122 = vmatprep.subr.bf16.mxu0 0
        %1123 = vmatpush1.bf16.msra.mxu0 0
        %1124 = vmatprep.mubr.bf16.mxu0 0
        %1125 = vmatmul.mubr.bf16.gmra.mrb[0].mxu0 %v1081
        %v1126 = vpop.f32.mrb[0].mxu0
        %v1127 = vadd.f32 0.0, %v1126
        %v1128 = vpop.f32.mrb[0].mxu0
        %v1129 = vpop.f32.mrb[0].mxu0
        %v1130 = vadd.f32 0.0, %v1129
        %v1131 = vpop.f32.mrb[0].mxu0
        %1132 = vmatprep.mubr.bf16.mxu0 0
        %1133 = vmatmul.mubr.bf16.gmra.mrb[0].mxu0 %v1084
        %v1134 = vpop.f32.mrb[0].mxu0
        %v1135 = vadd.f32 0.0, %v1134
        %v1136 = vpop.f32.mrb[0].mxu0
        %v1137 = vpop.f32.mrb[0].mxu0
        %v1138 = vadd.f32 0.0, %v1137
        %v1139 = vpop.f32.mrb[0].mxu0
        %1140 = vmatprep.mubr.bf16.mxu0 0
        %1141 = vmatmul.mubr.bf16.gmra.mrb[0].mxu0 %v1087
        %v1142 = vpop.f32.mrb[0].mxu0
        %v1143 = vadd.f32 0.0, %v1142
        %v1144 = vpop.f32.mrb[0].mxu0
        %v1145 = vpop.f32.mrb[0].mxu0
        %v1146 = vadd.f32 0.0, %v1145
        %v1147 = vpop.f32.mrb[0].mxu0
        %1148 = vmatprep.mubr.bf16.mxu0 0
        %1149 = vmatmul.mubr.bf16.gmra.mrb[0].mxu0 %v1090
        %v1150 = vpop.f32.mrb[0].mxu0
        %v1151 = vadd.f32 0.0, %v1150
        %v1152 = vpop.f32.mrb[0].mxu0
        %v1153 = vpop.f32.mrb[0].mxu0
        %v1154 = vadd.f32 0.0, %v1153
        %v1155 = vpop.f32.mrb[0].mxu0
        %1156 = vdwg.mxu0
        %1165 = vrot.lane.b32.xlu0 %v1127, 32
        %v1166 = vpop.permute.xlu0 %1165
        %1167 = vrot.lane.b32.xlu0 %v1130, 32
        %v1168 = vpop.permute.xlu0 %1167
        %1169 = vrot.lane.b32.xlu0 %v1135, 32
        %v1170 = vpop.permute.xlu0 %1169
        %1171 = vrot.lane.b32.xlu0 %v1138, 32
        %v1172 = vpop.permute.xlu0 %1171
        %1173 = vrot.lane.b32.xlu0 %v1143, 32
        %v1174 = vpop.permute.xlu0 %1173
        %1175 = vrot.lane.b32.xlu0 %v1146, 32
        %v1176 = vpop.permute.xlu0 %1175
        %1177 = vrot.lane.b32.xlu0 %v1151, 32
        %v1178 = vpop.permute.xlu0 %1177
        %1179 = vrot.lane.b32.xlu0 %v1154, 32
        %v1180 = vpop.permute.xlu0 %1179
        %vm1189 = vcmask 523520
        %1190 = vst.msk [vmem:[#allocation2] sm:$0xff] %vm1189, %v1166
        %1191 = vst.msk [vmem:[#allocation2 + $0x8] sm:$0xff] %vm1189, %v1168
        %1192 = vst.msk [vmem:[#allocation2 + $0x10] sm:$0xff] %vm1189, %v1170
        %1193 = vst.msk [vmem:[#allocation2 + $0x18] sm:$0xff] %vm1189, %v1172
        %1194 = vst.msk [vmem:[#allocation2 + $0x20] sm:$0xff] %vm1189, %v1174
        %1195 = vst.msk [vmem:[#allocation2 + $0x28] sm:$0xff] %vm1189, %v1176
        %1196 = vst.msk [vmem:[#allocation2 + $0x30] sm:$0xff] %vm1189, %v1178
        %1197 = vst.msk [vmem:[#allocation2 + $0x38] sm:$0xff] %vm1189, %v1180
        %v1198 = vld [vmem:[#allocation2] sm:$0xff]
        %v1199 = vld [vmem:[#allocation2 + $0x8] sm:$0xff]
        %v1200 = vld [vmem:[#allocation2 + $0x10] sm:$0xff]
        %v1201 = vld [vmem:[#allocation2 + $0x18] sm:$0xff]
        %v1202 = vld [vmem:[#allocation2 + $0x20] sm:$0xff]
        %v1203 = vld [vmem:[#allocation2 + $0x28] sm:$0xff]
        %v1204 = vld [vmem:[#allocation2 + $0x30] sm:$0xff]
        %v1205 = vld [vmem:[#allocation2 + $0x38] sm:$0xff]
        %1206 = vst.msk [vmem:[#allocation3] sm:$0xff] %vm497, 0.0
        %1207 = vst.msk [vmem:[#allocation3 + $0x8] sm:$0xff] %vm497, 0.0
        %vm1208 = vcmask 516096
        %1209 = vst.msk [vmem:[#allocation3 + $0x10] sm:$0x1] %vm1208, 0.0
        %1210 = vst.msk [vmem:[#allocation3 + $0x18] sm:$0xff] %vm497, 0.0
        %1211 = vst.msk [vmem:[#allocation3 + $0x20] sm:$0xff] %vm497, 0.0
        %1212 = vst.msk [vmem:[#allocation3 + $0x28] sm:$0x1] %vm1208, 0.0
        %1213 = vst.msk [vmem:[#allocation3 + $0x30] sm:$0xff] %vm497, 0.0
        %1214 = vst.msk [vmem:[#allocation3 + $0x38] sm:$0xff] %vm497, 0.0
        %1215 = vst.msk [vmem:[#allocation3 + $0x40] sm:$0x1] %vm1208, 0.0
        %1216 = vst.msk [vmem:[#allocation3 + $0x48] sm:$0xff] %vm497, 0.0
        %1217 = vst.msk [vmem:[#allocation3 + $0x50] sm:$0xff] %vm497, 0.0
        %1218 = vst.msk [vmem:[#allocation3 + $0x58] sm:$0x1] %vm1208, 0.0
        %1219 = vst.msk [vmem:[#allocation3 + $0x60] sm:$0xff] %vm497, 0.0
        %1220 = vst.msk [vmem:[#allocation3 + $0x68] sm:$0xff] %vm497, 0.0
        %1221 = vst.msk [vmem:[#allocation3 + $0x70] sm:$0x1] %vm1208, 0.0
        %1222 = vst.msk [vmem:[#allocation3 + $0x78] sm:$0xff] %vm497, 0.0
        %1223 = vst.msk [vmem:[#allocation3 + $0x80] sm:$0xff] %vm497, 0.0
        %1224 = vst.msk [vmem:[#allocation3 + $0x88] sm:$0x1] %vm1208, 0.0
        %1225 = vst.msk [vmem:[#allocation3 + $0x90] sm:$0xff] %vm497, 0.0
        %1226 = vst.msk [vmem:[#allocation3 + $0x98] sm:$0xff] %vm497, 0.0
        %1227 = vst.msk [vmem:[#allocation3 + $0xa0] sm:$0x1] %vm1208, 0.0
        %1228 = vst.msk [vmem:[#allocation3 + $0xa8] sm:$0xff] %vm497, 0.0
        %1229 = vst.msk [vmem:[#allocation3 + $0xb0] sm:$0xff] %vm497, 0.0
        %1230 = vst.msk [vmem:[#allocation3 + $0xb8] sm:$0x1] %vm1208, 0.0
        %1231 = vst.msk [vmem:[#allocation3 + $0xc0] sm:$0xff] %vm497, 0.0
        %1232 = vst.msk [vmem:[#allocation3 + $0xc8] sm:$0xff] %vm497, 0.0
        %1233 = vst.msk [vmem:[#allocation3 + $0xd0] sm:$0x1] %vm1208, 0.0
        %1234 = vst.msk [vmem:[#allocation3 + $0xd8] sm:$0xff] %vm497, 0.0
        %1235 = vst.msk [vmem:[#allocation3 + $0xe0] sm:$0xff] %vm497, 0.0
        %1236 = vst.msk [vmem:[#allocation3 + $0xe8] sm:$0x1] %vm1208, 0.0
        %1245 = vrot.lane.b32.xlu0 %v545, 64
        %v1246 = vpop.permute.xlu0 %1245
        %1247 = vrot.lane.b32.xlu0 %v548, 64
        %v1248 = vpop.permute.xlu0 %1247
        %1249 = vrot.lane.b32.xlu0 %v553, 64
        %v1250 = vpop.permute.xlu0 %1249
        %1251 = vrot.lane.b32.xlu0 %v556, 64
        %v1252 = vpop.permute.xlu0 %1251
        %1253 = vrot.lane.b32.xlu0 %v561, 64
        %v1254 = vpop.permute.xlu0 %1253
        %1255 = vrot.lane.b32.xlu0 %v564, 64
        %v1256 = vpop.permute.xlu0 %1255
        %1257 = vrot.lane.b32.xlu0 %v569, 64
        %v1258 = vpop.permute.xlu0 %1257
        %1259 = vrot.lane.b32.xlu0 %v572, 64
        %v1260 = vpop.permute.xlu0 %1259
        %s1269 = scalar_lea.vmem [#allocation3], 24
        %1270 = vst.msk [vmem:[%s1269 + $0x8] sm:$0xff] %vm497, %v1246
        %1271 = vst.msk [vmem:[%s1269 + $0x20] sm:$0xff] %vm497, %v1248
        %1272 = vst.msk [vmem:[%s1269 + $0x38] sm:$0xff] %vm497, %v1250
        %1273 = vst.msk [vmem:[%s1269 + $0x50] sm:$0xff] %vm497, %v1252
        %1274 = vst.msk [vmem:[%s1269 + $0x68] sm:$0xff] %vm497, %v1254
        %1275 = vst.msk [vmem:[%s1269 + $0x80] sm:$0xff] %vm497, %v1256
        %1276 = vst.msk [vmem:[%s1269 + $0x98] sm:$0xff] %vm497, %v1258
        %1277 = vst.msk [vmem:[%s1269 + $0xb0] sm:$0xff] %vm497, %v1260
        %v1278 = vld [vmem:[#allocation3] sm:$0xff]
        %v1279 = vld [vmem:[#allocation3 + $0x8] sm:$0xff]
        %v1280 = vld [vmem:[#allocation3 + $0x10] sm:$0x1]
        %v1281 = vld [vmem:[#allocation3 + $0x18] sm:$0xff]
        %v1282 = vld [vmem:[#allocation3 + $0x20] sm:$0xff]
        %v1283 = vld [vmem:[#allocation3 + $0x28] sm:$0x1]
        %v1284 = vld [vmem:[#allocation3 + $0x30] sm:$0xff]
        %v1285 = vld [vmem:[#allocation3 + $0x38] sm:$0xff]
        %v1286 = vld [vmem:[#allocation3 + $0x40] sm:$0x1]
        %v1287 = vld [vmem:[#allocation3 + $0x48] sm:$0xff]
        %v1288 = vld [vmem:[#allocation3 + $0x50] sm:$0xff]
        %v1289 = vld [vmem:[#allocation3 + $0x58] sm:$0x1]
        %v1290 = vld [vmem:[#allocation3 + $0x60] sm:$0xff]
        %v1291 = vld [vmem:[#allocation3 + $0x68] sm:$0xff]
        %v1292 = vld [vmem:[#allocation3 + $0x70] sm:$0x1]
        %v1293 = vld [vmem:[#allocation3 + $0x78] sm:$0xff]
        %v1294 = vld [vmem:[#allocation3 + $0x80] sm:$0xff]
        %v1295 = vld [vmem:[#allocation3 + $0x88] sm:$0x1]
        %v1296 = vld [vmem:[#allocation3 + $0x90] sm:$0xff]
        %v1297 = vld [vmem:[#allocation3 + $0x98] sm:$0xff]
        %v1298 = vld [vmem:[#allocation3 + $0xa0] sm:$0x1]
        %v1299 = vld [vmem:[#allocation3 + $0xa8] sm:$0xff]
        %v1300 = vld [vmem:[#allocation3 + $0xb0] sm:$0xff]
        %v1301 = vld [vmem:[#allocation3 + $0xb8] sm:$0x1]
        %v1302 = vld [vmem:[#allocation3 + $0xc0] sm:$0xff]
        %v1303 = vld [vmem:[#allocation3 + $0xc8] sm:$0xff]
        %v1304 = vld [vmem:[#allocation3 + $0xd0] sm:$0x1]
        %v1305 = vld [vmem:[#allocation3 + $0xd8] sm:$0xff]
        %v1306 = vld [vmem:[#allocation3 + $0xe0] sm:$0xff]
        %v1307 = vld [vmem:[#allocation3 + $0xe8] sm:$0x1]
        %v1308 = vld [vmem:[#allocation7] sm:$0xff]
        %v1309 = vld [vmem:[#allocation7 + $0x8] sm:$0x1]
        %v1310 = vld [vmem:[%s4] sm:$0x1]
        %v1312 = vlaneseq
        %v1313 = vshrl.u32 %v1312, 7
        %v1314 = vsub.s32 0, %v1313
        %v1315 = vrot.slane %v1310, %v1314
        %v1317 = vadd.f32 %v1198, %v1315
        %v1318 = vadd.f32 %v1199, %v1315
        %v1319 = vadd.f32 %v1200, %v1315
        %v1320 = vadd.f32 %v1201, %v1315
        %v1321 = vadd.f32 %v1202, %v1315
        %v1322 = vadd.f32 %v1203, %v1315
        %v1323 = vadd.f32 %v1204, %v1315
        %v1324 = vadd.f32 %v1205, %v1315
        %v1325 = vlaneseq
        %v1326 = vshrl.u32 %v1325, 7
        %v1327 = vsub.s32 0, %v1326
        %v1328 = vrot.slane %v1308, %v1327
        %v1329 = vmul.f32 %v1278, %v1328
        %v1330 = vmul.f32 %v1279, %v1328
        %v1331 = vmul.f32 %v1281, %v1328
        %v1332 = vmul.f32 %v1282, %v1328
        %v1333 = vmul.f32 %v1284, %v1328
        %v1334 = vmul.f32 %v1285, %v1328
        %v1335 = vmul.f32 %v1287, %v1328
        %v1336 = vmul.f32 %v1288, %v1328
        %v1337 = vmul.f32 %v1290, %v1328
        %v1338 = vmul.f32 %v1291, %v1328
        %v1339 = vmul.f32 %v1293, %v1328
        %v1340 = vmul.f32 %v1294, %v1328
        %v1341 = vmul.f32 %v1296, %v1328
        %v1342 = vmul.f32 %v1297, %v1328
        %v1343 = vmul.f32 %v1299, %v1328
        %v1344 = vmul.f32 %v1300, %v1328
        %vm1361 = vcmask 1040384
        %v1362 = vrot.slane %v1329, 7
        %v1363 = vrot.slane %v1330, 7
        %v1364 = vsel %vm1361, %v1362, %v1363
        %v1365 = vrot.slane %v1331, 7
        %v1366 = vrot.slane %v1332, 7
        %v1367 = vsel %vm1361, %v1365, %v1366
        %v1368 = vrot.slane %v1333, 7
        %v1369 = vrot.slane %v1334, 7
        %v1370 = vsel %vm1361, %v1368, %v1369
        %v1371 = vrot.slane %v1335, 7
        %v1372 = vrot.slane %v1336, 7
        %v1373 = vsel %vm1361, %v1371, %v1372
        %v1374 = vrot.slane %v1337, 7
        %v1375 = vrot.slane %v1338, 7
        %v1376 = vsel %vm1361, %v1374, %v1375
        %v1377 = vrot.slane %v1339, 7
        %v1378 = vrot.slane %v1340, 7
        %v1379 = vsel %vm1361, %v1377, %v1378
        %v1380 = vrot.slane %v1341, 7
        %v1381 = vrot.slane %v1342, 7
        %v1382 = vsel %vm1361, %v1380, %v1381
        %v1383 = vrot.slane %v1343, 7
        %v1384 = vrot.slane %v1344, 7
        %v1385 = vsel %vm1361, %v1383, %v1384
        %v1394 = vadd.f32 %v1317, %v1364
        %v1395 = vadd.f32 %v1318, %v1367
        %v1396 = vadd.f32 %v1319, %v1370
        %v1397 = vadd.f32 %v1320, %v1373
        %v1398 = vadd.f32 %v1321, %v1376
        %v1399 = vadd.f32 %v1322, %v1379
        %v1400 = vadd.f32 %v1323, %v1382
        %v1401 = vadd.f32 %v1324, %v1385
        %v1402 = vlaneseq
        %v1403 = vshrl.u32 %v1402, 7
        %v1404 = vsub.s32 1, %v1403
        %v1405 = vrot.slane %v1308, %v1404
        %v1406 = vmul.f32 %v1279, %v1405
        %v1407 = vmul.f32 %v1282, %v1405
        %v1408 = vmul.f32 %v1285, %v1405
        %v1409 = vmul.f32 %v1288, %v1405
        %v1410 = vmul.f32 %v1291, %v1405
        %v1411 = vmul.f32 %v1294, %v1405
        %v1412 = vmul.f32 %v1297, %v1405
        %v1413 = vmul.f32 %v1300, %v1405
        %v1414 = vadd.f32 %v1394, %v1406
        %v1415 = vadd.f32 %v1395, %v1407
        %v1416 = vadd.f32 %v1396, %v1408
        %v1417 = vadd.f32 %v1397, %v1409
        %v1418 = vadd.f32 %v1398, %v1410
        %v1419 = vadd.f32 %v1399, %v1411
        %v1420 = vadd.f32 %v1400, %v1412
        %v1421 = vadd.f32 %v1401, %v1413
        %v1422 = vlaneseq
        %v1423 = vshrl.u32 %v1422, 7
        %v1424 = vsub.s32 2, %v1423
        %v1425 = vrot.slane %v1308, %v1424
        %v1426 = vmul.f32 %v1279, %v1425
        %v1427 = vmul.f32 %v1280, %v1425
        %v1428 = vmul.f32 %v1282, %v1425
        %v1429 = vmul.f32 %v1283, %v1425
        %v1430 = vmul.f32 %v1285, %v1425
        %v1431 = vmul.f32 %v1286, %v1425
        %v1432 = vmul.f32 %v1288, %v1425
        %v1433 = vmul.f32 %v1289, %v1425
        %v1434 = vmul.f32 %v1291, %v1425
        %v1435 = vmul.f32 %v1292, %v1425
        %v1436 = vmul.f32 %v1294, %v1425
        %v1437 = vmul.f32 %v1295, %v1425
        %v1438 = vmul.f32 %v1297, %v1425
        %v1439 = vmul.f32 %v1298, %v1425
        %v1440 = vmul.f32 %v1300, %v1425
        %v1441 = vmul.f32 %v1301, %v1425
        %vm1458 = vcmask 1046528
        %v1459 = vrot.slane %v1426, 1
        %v1460 = vrot.slane %v1427, 1
        %v1461 = vsel %vm1458, %v1459, %v1460
        %v1462 = vrot.slane %v1428, 1
        %v1463 = vrot.slane %v1429, 1
        %v1464 = vsel %vm1458, %v1462, %v1463
        %v1465 = vrot.slane %v1430, 1
        %v1466 = vrot.slane %v1431, 1
        %v1467 = vsel %vm1458, %v1465, %v1466
        %v1468 = vrot.slane %v1432, 1
        %v1469 = vrot.slane %v1433, 1
        %v1470 = vsel %vm1458, %v1468, %v1469
        %v1471 = vrot.slane %v1434, 1
        %v1472 = vrot.slane %v1435, 1
        %v1473 = vsel %vm1458, %v1471, %v1472
        %v1474 = vrot.slane %v1436, 1
        %v1475 = vrot.slane %v1437, 1
        %v1476 = vsel %vm1458, %v1474, %v1475
        %v1477 = vrot.slane %v1438, 1
        %v1478 = vrot.slane %v1439, 1
        %v1479 = vsel %vm1458, %v1477, %v1478
        %v1480 = vrot.slane %v1440, 1
        %v1481 = vrot.slane %v1441, 1
        %v1482 = vsel %vm1458, %v1480, %v1481
        %v1491 = vadd.f32 %v1414, %v1461
        %v1492 = vadd.f32 %v1415, %v1464
        %v1493 = vadd.f32 %v1416, %v1467
        %v1494 = vadd.f32 %v1417, %v1470
        %v1495 = vadd.f32 %v1418, %v1473
        %v1496 = vadd.f32 %v1419, %v1476
        %v1497 = vadd.f32 %v1420, %v1479
        %v1498 = vadd.f32 %v1421, %v1482
        %v1499 = vlaneseq
        %v1500 = vshrl.u32 %v1499, 7
        %v1501 = vsub.s32 3, %v1500
        %v1502 = vrot.slane %v1308, %v1501
        %v1503 = vmul.f32 %v1281, %v1502
        %v1504 = vmul.f32 %v1282, %v1502
        %v1505 = vmul.f32 %v1284, %v1502
        %v1506 = vmul.f32 %v1285, %v1502
        %v1507 = vmul.f32 %v1287, %v1502
        %v1508 = vmul.f32 %v1288, %v1502
        %v1509 = vmul.f32 %v1290, %v1502
        %v1510 = vmul.f32 %v1291, %v1502
        %v1511 = vmul.f32 %v1293, %v1502
        %v1512 = vmul.f32 %v1294, %v1502
        %v1513 = vmul.f32 %v1296, %v1502
        %v1514 = vmul.f32 %v1297, %v1502
        %v1515 = vmul.f32 %v1299, %v1502
        %v1516 = vmul.f32 %v1300, %v1502
        %v1517 = vmul.f32 %v1302, %v1502
        %v1518 = vmul.f32 %v1303, %v1502
        %v1535 = vrot.slane %v1503, 7
        %v1536 = vrot.slane %v1504, 7
        %v1537 = vsel %vm1361, %v1535, %v1536
        %v1538 = vrot.slane %v1505, 7
        %v1539 = vrot.slane %v1506, 7
        %v1540 = vsel %vm1361, %v1538, %v1539
        %v1541 = vrot.slane %v1507, 7
        %v1542 = vrot.slane %v1508, 7
        %v1543 = vsel %vm1361, %v1541, %v1542
        %v1544 = vrot.slane %v1509, 7
        %v1545 = vrot.slane %v1510, 7
        %v1546 = vsel %vm1361, %v1544, %v1545
        %v1547 = vrot.slane %v1511, 7
        %v1548 = vrot.slane %v1512, 7
        %v1549 = vsel %vm1361, %v1547, %v1548
        %v1550 = vrot.slane %v1513, 7
        %v1551 = vrot.slane %v1514, 7
        %v1552 = vsel %vm1361, %v1550, %v1551
        %v1553 = vrot.slane %v1515, 7
        %v1554 = vrot.slane %v1516, 7
        %v1555 = vsel %vm1361, %v1553, %v1554
        %v1556 = vrot.slane %v1517, 7
        %v1557 = vrot.slane %v1518, 7
        %v1558 = vsel %vm1361, %v1556, %v1557
        %v1567 = vadd.f32 %v1491, %v1537
        %v1568 = vadd.f32 %v1492, %v1540
        %v1569 = vadd.f32 %v1493, %v1543
        %v1570 = vadd.f32 %v1494, %v1546
        %v1571 = vadd.f32 %v1495, %v1549
        %v1572 = vadd.f32 %v1496, %v1552
        %v1573 = vadd.f32 %v1497, %v1555
        %v1574 = vadd.f32 %v1498, %v1558
        %v1575 = vlaneseq
        %v1576 = vshrl.u32 %v1575, 7
        %v1577 = vsub.s32 4, %v1576
        %v1578 = vrot.slane %v1308, %v1577
        %v1579 = vmul.f32 %v1282, %v1578
        %v1580 = vmul.f32 %v1285, %v1578
        %v1581 = vmul.f32 %v1288, %v1578
        %v1582 = vmul.f32 %v1291, %v1578
        %v1583 = vmul.f32 %v1294, %v1578
        %v1584 = vmul.f32 %v1297, %v1578
        %v1585 = vmul.f32 %v1300, %v1578
        %v1586 = vmul.f32 %v1303, %v1578
        %v1587 = vadd.f32 %v1567, %v1579
        %v1588 = vadd.f32 %v1568, %v1580
        %v1589 = vadd.f32 %v1569, %v1581
        %v1590 = vadd.f32 %v1570, %v1582
        %v1591 = vadd.f32 %v1571, %v1583
        %v1592 = vadd.f32 %v1572, %v1584
        %v1593 = vadd.f32 %v1573, %v1585
        %v1594 = vadd.f32 %v1574, %v1586
        %v1595 = vlaneseq
        %v1596 = vshrl.u32 %v1595, 7
        %v1597 = vsub.s32 5, %v1596
        %v1598 = vrot.slane %v1308, %v1597
        %v1599 = vmul.f32 %v1282, %v1598
        %v1600 = vmul.f32 %v1283, %v1598
        %v1601 = vmul.f32 %v1285, %v1598
        %v1602 = vmul.f32 %v1286, %v1598
        %v1603 = vmul.f32 %v1288, %v1598
        %v1604 = vmul.f32 %v1289, %v1598
        %v1605 = vmul.f32 %v1291, %v1598
        %v1606 = vmul.f32 %v1292, %v1598
        %v1607 = vmul.f32 %v1294, %v1598
        %v1608 = vmul.f32 %v1295, %v1598
        %v1609 = vmul.f32 %v1297, %v1598
        %v1610 = vmul.f32 %v1298, %v1598
        %v1611 = vmul.f32 %v1300, %v1598
        %v1612 = vmul.f32 %v1301, %v1598
        %v1613 = vmul.f32 %v1303, %v1598
        %v1614 = vmul.f32 %v1304, %v1598
        %v1631 = vrot.slane %v1599, 1
        %v1632 = vrot.slane %v1600, 1
        %v1633 = vsel %vm1458, %v1631, %v1632
        %v1634 = vrot.slane %v1601, 1
        %v1635 = vrot.slane %v1602, 1
        %v1636 = vsel %vm1458, %v1634, %v1635
        %v1637 = vrot.slane %v1603, 1
        %v1638 = vrot.slane %v1604, 1
        %v1639 = vsel %vm1458, %v1637, %v1638
        %v1640 = vrot.slane %v1605, 1
        %v1641 = vrot.slane %v1606, 1
        %v1642 = vsel %vm1458, %v1640, %v1641
        %v1643 = vrot.slane %v1607, 1
        %v1644 = vrot.slane %v1608, 1
        %v1645 = vsel %vm1458, %v1643, %v1644
        %v1646 = vrot.slane %v1609, 1
        %v1647 = vrot.slane %v1610, 1
        %v1648 = vsel %vm1458, %v1646, %v1647
        %v1649 = vrot.slane %v1611, 1
        %v1650 = vrot.slane %v1612, 1
        %v1651 = vsel %vm1458, %v1649, %v1650
        %v1652 = vrot.slane %v1613, 1
        %v1653 = vrot.slane %v1614, 1
        %v1654 = vsel %vm1458, %v1652, %v1653
        %v1663 = vadd.f32 %v1587, %v1633
        %v1664 = vadd.f32 %v1588, %v1636
        %v1665 = vadd.f32 %v1589, %v1639
        %v1666 = vadd.f32 %v1590, %v1642
        %v1667 = vadd.f32 %v1591, %v1645
        %v1668 = vadd.f32 %v1592, %v1648
        %v1669 = vadd.f32 %v1593, %v1651
        %v1670 = vadd.f32 %v1594, %v1654
        %v1671 = vlaneseq
        %v1672 = vshrl.u32 %v1671, 7
        %v1673 = vsub.s32 6, %v1672
        %v1674 = vrot.slane %v1308, %v1673
        %v1675 = vmul.f32 %v1284, %v1674
        %v1676 = vmul.f32 %v1285, %v1674
        %v1677 = vmul.f32 %v1287, %v1674
        %v1678 = vmul.f32 %v1288, %v1674
        %v1679 = vmul.f32 %v1290, %v1674
        %v1680 = vmul.f32 %v1291, %v1674
        %v1681 = vmul.f32 %v1293, %v1674
        %v1682 = vmul.f32 %v1294, %v1674
        %v1683 = vmul.f32 %v1296, %v1674
        %v1684 = vmul.f32 %v1297, %v1674
        %v1685 = vmul.f32 %v1299, %v1674
        %v1686 = vmul.f32 %v1300, %v1674
        %v1687 = vmul.f32 %v1302, %v1674
        %v1688 = vmul.f32 %v1303, %v1674
        %v1689 = vmul.f32 %v1305, %v1674
        %v1690 = vmul.f32 %v1306, %v1674
        %v1707 = vrot.slane %v1675, 7
        %v1708 = vrot.slane %v1676, 7
        %v1709 = vsel %vm1361, %v1707, %v1708
        %v1710 = vrot.slane %v1677, 7
        %v1711 = vrot.slane %v1678, 7
        %v1712 = vsel %vm1361, %v1710, %v1711
        %v1713 = vrot.slane %v1679, 7
        %v1714 = vrot.slane %v1680, 7
        %v1715 = vsel %vm1361, %v1713, %v1714
        %v1716 = vrot.slane %v1681, 7
        %v1717 = vrot.slane %v1682, 7
        %v1718 = vsel %vm1361, %v1716, %v1717
        %v1719 = vrot.slane %v1683, 7
        %v1720 = vrot.slane %v1684, 7
        %v1721 = vsel %vm1361, %v1719, %v1720
        %v1722 = vrot.slane %v1685, 7
        %v1723 = vrot.slane %v1686, 7
        %v1724 = vsel %vm1361, %v1722, %v1723
        %v1725 = vrot.slane %v1687, 7
        %v1726 = vrot.slane %v1688, 7
        %v1727 = vsel %vm1361, %v1725, %v1726
        %v1728 = vrot.slane %v1689, 7
        %v1729 = vrot.slane %v1690, 7
        %v1730 = vsel %vm1361, %v1728, %v1729
        %v1739 = vadd.f32 %v1663, %v1709
        %v1740 = vadd.f32 %v1664, %v1712
        %v1741 = vadd.f32 %v1665, %v1715
        %v1742 = vadd.f32 %v1666, %v1718
        %v1743 = vadd.f32 %v1667, %v1721
        %v1744 = vadd.f32 %v1668, %v1724
        %v1745 = vadd.f32 %v1669, %v1727
        %v1746 = vadd.f32 %v1670, %v1730
        %v1747 = vlaneseq
        %v1748 = vshrl.u32 %v1747, 7
        %v1749 = vsub.s32 7, %v1748
        %v1750 = vrot.slane %v1308, %v1749
        %v1751 = vmul.f32 %v1285, %v1750
        %v1752 = vmul.f32 %v1288, %v1750
        %v1753 = vmul.f32 %v1291, %v1750
        %v1754 = vmul.f32 %v1294, %v1750
        %v1755 = vmul.f32 %v1297, %v1750
        %v1756 = vmul.f32 %v1300, %v1750
        %v1757 = vmul.f32 %v1303, %v1750
        %v1758 = vmul.f32 %v1306, %v1750
        %v1759 = vadd.f32 %v1739, %v1751
        %v1760 = vadd.f32 %v1740, %v1752
        %v1761 = vadd.f32 %v1741, %v1753
        %v1762 = vadd.f32 %v1742, %v1754
        %v1763 = vadd.f32 %v1743, %v1755
        %v1764 = vadd.f32 %v1744, %v1756
        %v1765 = vadd.f32 %v1745, %v1757
        %v1766 = vadd.f32 %v1746, %v1758
        %v1767 = vlaneseq
        %v1768 = vshrl.u32 %v1767, 7
        %v1769 = vsub.s32 0, %v1768
        %v1770 = vrot.slane %v1309, %v1769
        %v1771 = vmul.f32 %v1285, %v1770
        %v1772 = vmul.f32 %v1286, %v1770
        %v1773 = vmul.f32 %v1288, %v1770
        %v1774 = vmul.f32 %v1289, %v1770
        %v1775 = vmul.f32 %v1291, %v1770
        %v1776 = vmul.f32 %v1292, %v1770
        %v1777 = vmul.f32 %v1294, %v1770
        %v1778 = vmul.f32 %v1295, %v1770
        %v1779 = vmul.f32 %v1297, %v1770
        %v1780 = vmul.f32 %v1298, %v1770
        %v1781 = vmul.f32 %v1300, %v1770
        %v1782 = vmul.f32 %v1301, %v1770
        %v1783 = vmul.f32 %v1303, %v1770
        %v1784 = vmul.f32 %v1304, %v1770
        %v1785 = vmul.f32 %v1306, %v1770
        %v1786 = vmul.f32 %v1307, %v1770
        %v1803 = vrot.slane %v1771, 1
        %v1804 = vrot.slane %v1772, 1
        %v1805 = vsel %vm1458, %v1803, %v1804
        %v1806 = vrot.slane %v1773, 1
        %v1807 = vrot.slane %v1774, 1
        %v1808 = vsel %vm1458, %v1806, %v1807
        %v1809 = vrot.slane %v1775, 1
        %v1810 = vrot.slane %v1776, 1
        %v1811 = vsel %vm1458, %v1809, %v1810
        %v1812 = vrot.slane %v1777, 1
        %v1813 = vrot.slane %v1778, 1
        %v1814 = vsel %vm1458, %v1812, %v1813
        %v1815 = vrot.slane %v1779, 1
        %v1816 = vrot.slane %v1780, 1
        %v1817 = vsel %vm1458, %v1815, %v1816
        %v1818 = vrot.slane %v1781, 1
        %v1819 = vrot.slane %v1782, 1
        %v1820 = vsel %vm1458, %v1818, %v1819
        %v1821 = vrot.slane %v1783, 1
        %v1822 = vrot.slane %v1784, 1
        %v1823 = vsel %vm1458, %v1821, %v1822
        %v1824 = vrot.slane %v1785, 1
        %v1825 = vrot.slane %v1786, 1
        %v1826 = vsel %vm1458, %v1824, %v1825
        %v1835 = vadd.f32 %v1759, %v1805
        %v1836 = vadd.f32 %v1760, %v1808
        %v1837 = vadd.f32 %v1761, %v1811
        %v1838 = vadd.f32 %v1762, %v1814
        %v1839 = vadd.f32 %v1763, %v1817
        %v1840 = vadd.f32 %v1764, %v1820
        %v1841 = vadd.f32 %v1765, %v1823
        %v1842 = vadd.f32 %v1766, %v1826
        %v1843 = vpack.c.bf16 %v1836, %v1835
        %v1844 = vpack.c.bf16 %v1838, %v1837
        %v1845 = vpack.c.bf16 %v1840, %v1839
        %v1846 = vpack.c.bf16 %v1842, %v1841
        %v1847 = vld [vmem:[%s5] sm:$0xf]
        %v1848 = vld [vmem:[%s5 + $0x4] sm:$0xf]
        %v1849 = vld [vmem:[%s5 + $0x8] sm:$0xf]
        %v1850 = vld [vmem:[%s5 + $0xc] sm:$0xf]
        %v1851 = vld [vmem:[%s5 + $0x10] sm:$0xf]
        %v1852 = vld [vmem:[%s5 + $0x14] sm:$0xf]
        %v1853 = vld [vmem:[%s5 + $0x18] sm:$0xf]
        %v1854 = vld [vmem:[%s5 + $0x1c] sm:$0xf]
        %v1855 = vld [vmem:[#allocation9] sm:$0x1]
        %v1857 = vlaneseq
        %v1858 = vshrl.u32 %v1857, 7
        %v1859 = vsub.s32 0, %v1858
        %v1860 = vrot.slane %v1855, %v1859
        %v1870 = vunpack.c.l.b16 %v1847
        %v1871 = vunpack.c.l.b16 %v1848
        %v1872 = vunpack.c.l.b16 %v1849
        %v1873 = vunpack.c.l.b16 %v1850
        %v1874 = vunpack.c.l.b16 %v1851
        %v1875 = vunpack.c.l.b16 %v1852
        %v1876 = vunpack.c.l.b16 %v1853
        %v1877 = vunpack.c.l.b16 %v1854
        %v1878 = vpack.c.b16 %v1871, %v1870
        %v1879 = vpack.c.b16 %v1873, %v1872
        %v1880 = vpack.c.b16 %v1875, %v1874
        %v1881 = vpack.c.b16 %v1877, %v1876
        %v1887 = vsel %vm497, %v1843, 0
        %v1890 = vsel %vm497, %v1844, 0
        %v1893 = vsel %vm497, %v1845, 0
        %v1896 = vsel %vm497, %v1846, 0
        %1898 = vmatprep.subr.bf16.mxu0 0
        %1899 = vmatpush1.bf16.msra.mxu0 %v1878
        %1900 = vmatprep.subr.bf16.mxu0 0
        %1901 = vmatpush1.bf16.msra.mxu0 %v1879
        %1902 = vmatprep.subr.bf16.mxu0 0
        %1903 = vmatpush1.bf16.msra.mxu0 %v1880
        %1904 = vmatprep.subr.bf16.mxu0 0
        %1905 = vmatpush1.bf16.msra.mxu0 %v1881
        %1906 = vmatprep.subr.bf16.mxu0 0
        %1907 = vmatpush1.bf16.msra.mxu0 0
        %1908 = vmatprep.subr.bf16.mxu0 0
        %1909 = vmatpush1.bf16.msra.mxu0 0
        %1910 = vmatprep.subr.bf16.mxu0 0
        %1911 = vmatpush1.bf16.msra.mxu0 0
        %1912 = vmatprep.subr.bf16.mxu0 0
        %1913 = vmatpush1.bf16.msra.mxu0 0
        %1914 = vmatprep.subr.bf16.mxu0 0
        %1915 = vmatpush1.bf16.msra.mxu0 0
        %1916 = vmatprep.subr.bf16.mxu0 0
        %1917 = vmatpush1.bf16.msra.mxu0 0
        %1918 = vmatprep.subr.bf16.mxu0 0
        %1919 = vmatpush1.bf16.msra.mxu0 0
        %1920 = vmatprep.subr.bf16.mxu0 0
        %1921 = vmatpush1.bf16.msra.mxu0 0
        %1922 = vmatprep.subr.bf16.mxu0 0
        %1923 = vmatpush1.bf16.msra.mxu0 0
        %1924 = vmatprep.subr.bf16.mxu0 0
        %1925 = vmatpush1.bf16.msra.mxu0 0
        %1926 = vmatprep.subr.bf16.mxu0 0
        %1927 = vmatpush1.bf16.msra.mxu0 0
        %1928 = vmatprep.subr.bf16.mxu0 0
        %1929 = vmatpush1.bf16.msra.mxu0 0
        %1930 = vmatprep.mubr.bf16.mxu0 0
        %1931 = vmatmul.mubr.bf16.gmra.mrb[0].mxu0 %v1887
        %v1932 = vpop.f32.mrb[0].mxu0
        %v1933 = vadd.f32 %v1860, %v1932
        %v1934 = vpop.f32.mrb[0].mxu0
        %v1935 = vpop.f32.mrb[0].mxu0
        %v1936 = vadd.f32 %v1860, %v1935
        %v1937 = vpop.f32.mrb[0].mxu0
        %1938 = vmatprep.mubr.bf16.mxu0 0
        %1939 = vmatmul.mubr.bf16.gmra.mrb[0].mxu0 %v1890
        %v1940 = vpop.f32.mrb[0].mxu0
        %v1941 = vadd.f32 %v1860, %v1940
        %v1942 = vpop.f32.mrb[0].mxu0
        %v1943 = vpop.f32.mrb[0].mxu0
        %v1944 = vadd.f32 %v1860, %v1943
        %v1945 = vpop.f32.mrb[0].mxu0
        %1946 = vmatprep.mubr.bf16.mxu0 0
        %1947 = vmatmul.mubr.bf16.gmra.mrb[0].mxu0 %v1893
        %v1948 = vpop.f32.mrb[0].mxu0
        %v1949 = vadd.f32 %v1860, %v1948
        %v1950 = vpop.f32.mrb[0].mxu0
        %v1951 = vpop.f32.mrb[0].mxu0
        %v1952 = vadd.f32 %v1860, %v1951
        %v1953 = vpop.f32.mrb[0].mxu0
        %1954 = vmatprep.mubr.bf16.mxu0 0
        %1955 = vmatmul.mubr.bf16.gmra.mrb[0].mxu0 %v1896
        %v1956 = vpop.f32.mrb[0].mxu0
        %v1957 = vadd.f32 %v1860, %v1956
        %v1958 = vpop.f32.mrb[0].mxu0
        %v1959 = vpop.f32.mrb[0].mxu0
        %v1960 = vadd.f32 %v1860, %v1959
        %v1961 = vpop.f32.mrb[0].mxu0
        %1962 = vdwg.mxu0
        %v1963 = vadd.f32 %v446, %v1933
        %v1964 = vadd.f32 %v447, %v1936
        %v1965 = vadd.f32 %v448, %v1941
        %v1966 = vadd.f32 %v449, %v1944
        %v1967 = vadd.f32 %v450, %v1949
        %v1968 = vadd.f32 %v451, %v1952
        %v1969 = vadd.f32 %v452, %v1957
        %v1970 = vadd.f32 %v453, %v1960
        %v1971 = vpack.c.bf16 %v1964, %v1963
        %v1972 = vpack.c.bf16 %v1966, %v1965
        %v1973 = vpack.c.bf16 %v1968, %v1967
        %v1974 = vpack.c.bf16 %v1970, %v1969
        %v1975 = vld [vmem:[%s7] sm:$0xf]
        %v1976 = vld [vmem:[%s7 + $0x4] sm:$0xf]
        %v1977 = vld [vmem:[%s7 + $0x8] sm:$0xf]
        %v1978 = vld [vmem:[%s7 + $0xc] sm:$0xf]
        %v1979 = vld [vmem:[%s7 + $0x10] sm:$0xf]
        %v1980 = vld [vmem:[%s7 + $0x14] sm:$0xf]
        %v1981 = vld [vmem:[%s7 + $0x18] sm:$0xf]
        %v1982 = vld [vmem:[%s7 + $0x1c] sm:$0xf]
        %v1983 = vld [vmem:[#allocation10] sm:$0x1]
        %v1985 = vlaneseq
        %v1986 = vshrl.u32 %v1985, 7
        %v1987 = vsub.s32 0, %v1986
        %v1988 = vrot.slane %v1983, %v1987
        %v1998 = vunpack.c.l.b16 %v1975
        %v1999 = vunpack.c.l.b16 %v1976
        %v2000 = vunpack.c.l.b16 %v1977
        %v2001 = vunpack.c.l.b16 %v1978
        %v2002 = vunpack.c.l.b16 %v1979
        %v2003 = vunpack.c.l.b16 %v1980
        %v2004 = vunpack.c.l.b16 %v1981
        %v2005 = vunpack.c.l.b16 %v1982
        %v2006 = vpack.c.b16 %v1999, %v1998
        %v2007 = vpack.c.b16 %v2001, %v2000
        %v2008 = vpack.c.b16 %v2003, %v2002
        %v2009 = vpack.c.b16 %v2005, %v2004
        %v2015 = vsel %vm497, %v1971, 0
        %v2018 = vsel %vm497, %v1972, 0
        %v2021 = vsel %vm497, %v1973, 0
        %v2024 = vsel %vm497, %v1974, 0
        %2026 = vmatprep.subr.bf16.mxu0 0
        %2027 = vmatpush1.bf16.msra.mxu0 %v2006
        %2028 = vmatprep.subr.bf16.mxu0 0
        %2029 = vmatpush1.bf16.msra.mxu0 %v2007
        %2030 = vmatprep.subr.bf16.mxu0 0
        %2031 = vmatpush1.bf16.msra.mxu0 %v2008
        %2032 = vmatprep.subr.bf16.mxu0 0
        %2033 = vmatpush1.bf16.msra.mxu0 %v2009
        %2034 = vmatprep.subr.bf16.mxu0 0
        %2035 = vmatpush1.bf16.msra.mxu0 0
        %2036 = vmatprep.subr.bf16.mxu0 0
        %2037 = vmatpush1.bf16.msra.mxu0 0
        %2038 = vmatprep.subr.bf16.mxu0 0
        %2039 = vmatpush1.bf16.msra.mxu0 0
        %2040 = vmatprep.subr.bf16.mxu0 0
        %2041 = vmatpush1.bf16.msra.mxu0 0
        %2042 = vmatprep.subr.bf16.mxu0 0
        %2043 = vmatpush1.bf16.msra.mxu0 0
        %2044 = vmatprep.subr.bf16.mxu0 0
        %2045 = vmatpush1.bf16.msra.mxu0 0
        %2046 = vmatprep.subr.bf16.mxu0 0
        %2047 = vmatpush1.bf16.msra.mxu0 0
        %2048 = vmatprep.subr.bf16.mxu0 0
        %2049 = vmatpush1.bf16.msra.mxu0 0
        %2050 = vmatprep.subr.bf16.mxu0 0
        %2051 = vmatpush1.bf16.msra.mxu0 0
        %2052 = vmatprep.subr.bf16.mxu0 0
        %2053 = vmatpush1.bf16.msra.mxu0 0
        %2054 = vmatprep.subr.bf16.mxu0 0
        %2055 = vmatpush1.bf16.msra.mxu0 0
        %2056 = vmatprep.subr.bf16.mxu0 0
        %2057 = vmatpush1.bf16.msra.mxu0 0
        %2058 = vmatprep.mubr.bf16.mxu0 0
        %2059 = vmatmul.mubr.bf16.gmra.mrb[0].mxu0 %v2015
        %v2060 = vpop.f32.mrb[0].mxu0
        %v2061 = vadd.f32 %v1988, %v2060
        %v2062 = vpop.f32.mrb[0].mxu0
        %v2063 = vpop.f32.mrb[0].mxu0
        %v2064 = vadd.f32 %v1988, %v2063
        %v2065 = vpop.f32.mrb[0].mxu0
        %2066 = vmatprep.mubr.bf16.mxu0 0
        %2067 = vmatmul.mubr.bf16.gmra.mrb[0].mxu0 %v2018
        %v2068 = vpop.f32.mrb[0].mxu0
        %v2069 = vadd.f32 %v1988, %v2068
        %v2070 = vpop.f32.mrb[0].mxu0
        %v2071 = vpop.f32.mrb[0].mxu0
        %v2072 = vadd.f32 %v1988, %v2071
        %v2073 = vpop.f32.mrb[0].mxu0
        %2074 = vmatprep.mubr.bf16.mxu0 0
        %2075 = vmatmul.mubr.bf16.gmra.mrb[0].mxu0 %v2021
        %v2076 = vpop.f32.mrb[0].mxu0
        %v2077 = vadd.f32 %v1988, %v2076
        %v2078 = vpop.f32.mrb[0].mxu0
        %v2079 = vpop.f32.mrb[0].mxu0
        %v2080 = vadd.f32 %v1988, %v2079
        %v2081 = vpop.f32.mrb[0].mxu0
        %2082 = vmatprep.mubr.bf16.mxu0 0
        %2083 = vmatmul.mubr.bf16.gmra.mrb[0].mxu0 %v2024
        %v2084 = vpop.f32.mrb[0].mxu0
        %v2085 = vadd.f32 %v1988, %v2084
        %v2086 = vpop.f32.mrb[0].mxu0
        %v2087 = vpop.f32.mrb[0].mxu0
        %v2088 = vadd.f32 %v1988, %v2087
        %v2089 = vpop.f32.mrb[0].mxu0
        %2090 = vdwg.mxu0
        %v2091 = vxor.u32 %v2061, 2147483648
        %v2092 = vxor.u32 %v2064, 2147483648
        %v2093 = vxor.u32 %v2069, 2147483648
        %v2094 = vxor.u32 %v2072, 2147483648
        %v2095 = vxor.u32 %v2077, 2147483648
        %v2096 = vxor.u32 %v2080, 2147483648
        %v2097 = vxor.u32 %v2085, 2147483648
        %v2098 = vxor.u32 %v2088, 2147483648
        %v2099 = vmul.f32 %v2091, 1.442695
        %v2100 = vpow.pop %v2099
        %v2101 = vmul.f32 %v2092, 1.442695
        %v2102 = vpow.pop %v2101
        %v2103 = vmul.f32 %v2093, 1.442695
        %v2104 = vpow.pop %v2103
        %v2105 = vmul.f32 %v2094, 1.442695
        %v2106 = vpow.pop %v2105
        %v2107 = vmul.f32 %v2095, 1.442695
        %v2108 = vpow.pop %v2107
        %v2109 = vmul.f32 %v2096, 1.442695
        %v2110 = vpow.pop %v2109
        %v2111 = vmul.f32 %v2097, 1.442695
        %v2112 = vpow.pop %v2111
        %v2113 = vmul.f32 %v2098, 1.442695
        %v2114 = vpow.pop %v2113
        %v2115 = vadd.f32 %v2100, 1.0
        %v2116 = vadd.f32 %v2102, 1.0
        %v2117 = vadd.f32 %v2104, 1.0
        %v2118 = vadd.f32 %v2106, 1.0
        %v2119 = vadd.f32 %v2108, 1.0
        %v2120 = vadd.f32 %v2110, 1.0
        %v2121 = vadd.f32 %v2112, 1.0
        %v2122 = vadd.f32 %v2114, 1.0
        %v2123 = vrcp.pop %v2115
        %v2124 = vmul.f32 1.0, %v2123
        %v2125 = vrcp.pop %v2116
        %v2126 = vmul.f32 1.0, %v2125
        %v2127 = vrcp.pop %v2117
        %v2128 = vmul.f32 1.0, %v2127
        %v2129 = vrcp.pop %v2118
        %v2130 = vmul.f32 1.0, %v2129
        %v2131 = vrcp.pop %v2119
        %v2132 = vmul.f32 1.0, %v2131
        %v2133 = vrcp.pop %v2120
        %v2134 = vmul.f32 1.0, %v2133
        %v2135 = vrcp.pop %v2121
        %v2136 = vmul.f32 1.0, %v2135
        %v2137 = vrcp.pop %v2122
        %v2138 = vmul.f32 1.0, %v2137
        %v2139 = vmul.f32 %v2061, %v2124
        %v2140 = vmul.f32 %v2064, %v2126
        %v2141 = vmul.f32 %v2069, %v2128
        %v2142 = vmul.f32 %v2072, %v2130
        %v2143 = vmul.f32 %v2077, %v2132
        %v2144 = vmul.f32 %v2080, %v2134
        %v2145 = vmul.f32 %v2085, %v2136
        %v2146 = vmul.f32 %v2088, %v2138
        %v2147 = vpack.c.bf16 %v2140, %v2139
        %v2148 = vpack.c.bf16 %v2142, %v2141
        %v2149 = vpack.c.bf16 %v2144, %v2143
        %v2150 = vpack.c.bf16 %v2146, %v2145
        %v2151 = vld [vmem:[%s9] sm:$0xf]
        %v2152 = vld [vmem:[%s9 + $0x4] sm:$0xf]
        %v2153 = vld [vmem:[%s9 + $0x8] sm:$0xf]
        %v2154 = vld [vmem:[%s9 + $0xc] sm:$0xf]
        %v2155 = vld [vmem:[%s9 + $0x10] sm:$0xf]
        %v2156 = vld [vmem:[%s9 + $0x14] sm:$0xf]
        %v2157 = vld [vmem:[%s9 + $0x18] sm:$0xf]
        %v2158 = vld [vmem:[%s9 + $0x1c] sm:$0xf]
        %v2159 = vld [vmem:[%s9 + $0x20] sm:$0xf]
        %v2160 = vld [vmem:[%s9 + $0x24] sm:$0xf]
        %v2161 = vld [vmem:[%s9 + $0x28] sm:$0xf]
        %v2162 = vld [vmem:[%s9 + $0x2c] sm:$0xf]
        %v2163 = vld [vmem:[%s9 + $0x30] sm:$0xf]
        %v2164 = vld [vmem:[%s9 + $0x34] sm:$0xf]
        %v2165 = vld [vmem:[%s9 + $0x38] sm:$0xf]
        %v2166 = vld [vmem:[%s9 + $0x3c] sm:$0xf]
        %v2167 = vld [vmem:[%s10] sm:$0x1]
        %v2169 = vlaneseq
        %v2170 = vshrl.u32 %v2169, 7
        %v2171 = vsub.s32 0, %v2170
        %v2172 = vrot.slane %v2167, %v2171
        %v2190 = vunpack.c.l.b16 %v2151
        %v2191 = vunpack.c.l.b16 %v2152
        %v2192 = vunpack.c.l.b16 %v2153
        %v2193 = vunpack.c.l.b16 %v2154
        %v2194 = vunpack.c.l.b16 %v2155
        %v2195 = vunpack.c.l.b16 %v2156
        %v2196 = vunpack.c.l.b16 %v2157
        %v2197 = vunpack.c.l.b16 %v2158
        %v2198 = vunpack.c.l.b16 %v2159
        %v2199 = vunpack.c.l.b16 %v2160
        %v2200 = vunpack.c.l.b16 %v2161
        %v2201 = vunpack.c.l.b16 %v2162
        %v2202 = vunpack.c.l.b16 %v2163
        %v2203 = vunpack.c.l.b16 %v2164
        %v2204 = vunpack.c.l.b16 %v2165
        %v2205 = vunpack.c.l.b16 %v2166
        %v2206 = vpack.c.b16 %v2191, %v2190
        %v2207 = vpack.c.b16 %v2193, %v2192
        %v2208 = vpack.c.b16 %v2195, %v2194
        %v2209 = vpack.c.b16 %v2197, %v2196
        %v2210 = vpack.c.b16 %v2199, %v2198
        %v2211 = vpack.c.b16 %v2201, %v2200
        %v2212 = vpack.c.b16 %v2203, %v2202
        %v2213 = vpack.c.b16 %v2205, %v2204
        %2222 = vmatprep.subr.bf16.mxu0 0
        %2223 = vmatpush1.bf16.msra.mxu0 %v2206
        %2224 = vmatprep.subr.bf16.mxu0 0
        %2225 = vmatpush1.bf16.msra.mxu0 %v2207
        %2226 = vmatprep.subr.bf16.mxu0 0
        %2227 = vmatpush1.bf16.msra.mxu0 %v2208
        %2228 = vmatprep.subr.bf16.mxu0 0
        %2229 = vmatpush1.bf16.msra.mxu0 %v2209
        %2230 = vmatprep.subr.bf16.mxu0 0
        %2231 = vmatpush1.bf16.msra.mxu0 %v2210
        %2232 = vmatprep.subr.bf16.mxu0 0
        %2233 = vmatpush1.bf16.msra.mxu0 %v2211
        %2234 = vmatprep.subr.bf16.mxu0 0
        %2235 = vmatpush1.bf16.msra.mxu0 %v2212
        %2236 = vmatprep.subr.bf16.mxu0 0
        %2237 = vmatpush1.bf16.msra.mxu0 %v2213
        %2238 = vmatprep.subr.bf16.mxu0 0
        %2239 = vmatpush1.bf16.msra.mxu0 0
        %2240 = vmatprep.subr.bf16.mxu0 0
        %2241 = vmatpush1.bf16.msra.mxu0 0
        %2242 = vmatprep.subr.bf16.mxu0 0
        %2243 = vmatpush1.bf16.msra.mxu0 0
        %2244 = vmatprep.subr.bf16.mxu0 0
        %2245 = vmatpush1.bf16.msra.mxu0 0
        %2246 = vmatprep.subr.bf16.mxu0 0
        %2247 = vmatpush1.bf16.msra.mxu0 0
        %2248 = vmatprep.subr.bf16.mxu0 0
        %2249 = vmatpush1.bf16.msra.mxu0 0
        %2250 = vmatprep.subr.bf16.mxu0 0
        %2251 = vmatpush1.bf16.msra.mxu0 0
        %2252 = vmatprep.subr.bf16.mxu0 0
        %2253 = vmatpush1.bf16.msra.mxu0 0
        %2254 = vmatprep.mubr.bf16.mxu0 0
        %2255 = vmatmul.mubr.bf16.gmra.mrb[0].mxu0 %v2147
        %v2256 = vpop.f32.mrb[0].mxu0
        %v2257 = vadd.f32 %v2172, %v2256
        %v2258 = vpop.f32.mrb[0].mxu0
        %v2259 = vpop.f32.mrb[0].mxu0
        %v2260 = vadd.f32 %v2172, %v2259
        %v2261 = vpop.f32.mrb[0].mxu0
        %2262 = vmatprep.mubr.bf16.mxu0 0
        %2263 = vmatmul.mubr.bf16.gmra.mrb[0].mxu0 %v2148
        %v2264 = vpop.f32.mrb[0].mxu0
        %v2265 = vadd.f32 %v2172, %v2264
        %v2266 = vpop.f32.mrb[0].mxu0
        %v2267 = vpop.f32.mrb[0].mxu0
        %v2268 = vadd.f32 %v2172, %v2267
        %v2269 = vpop.f32.mrb[0].mxu0
        %2270 = vmatprep.mubr.bf16.mxu0 0
        %2271 = vmatmul.mubr.bf16.gmra.mrb[0].mxu0 %v2149
        %v2272 = vpop.f32.mrb[0].mxu0
        %v2273 = vadd.f32 %v2172, %v2272
        %v2274 = vpop.f32.mrb[0].mxu0
        %v2275 = vpop.f32.mrb[0].mxu0
        %v2276 = vadd.f32 %v2172, %v2275
        %v2277 = vpop.f32.mrb[0].mxu0
        %2278 = vmatprep.mubr.bf16.mxu0 0
        %2279 = vmatmul.mubr.bf16.gmra.mrb[0].mxu0 %v2150
        %v2280 = vpop.f32.mrb[0].mxu0
        %v2281 = vadd.f32 %v2172, %v2280
        %v2282 = vpop.f32.mrb[0].mxu0
        %v2283 = vpop.f32.mrb[0].mxu0
        %v2284 = vadd.f32 %v2172, %v2283
        %v2285 = vpop.f32.mrb[0].mxu0
        %2286 = vdwg.mxu0
        %v2287 = vadd.f32 %v1963, %v2257
        %v2288 = vadd.f32 %v1964, %v2260
        %v2289 = vadd.f32 %v1965, %v2265
        %v2290 = vadd.f32 %v1966, %v2268
        %v2291 = vadd.f32 %v1967, %v2273
        %v2292 = vadd.f32 %v1968, %v2276
        %v2293 = vadd.f32 %v1969, %v2281
        %v2294 = vadd.f32 %v1970, %v2284
        %2295 = vst.msk [vmem:[%s444] sm:$0xff] %vm497, %v2287
        %2296 = vst.msk [vmem:[%s444 + $0x8] sm:$0xff] %vm497, %v2288
        %2297 = vst.msk [vmem:[%s444 + $0x10] sm:$0xff] %vm497, %v2289
        %2298 = vst.msk [vmem:[%s444 + $0x18] sm:$0xff] %vm497, %v2290
        %2299 = vst.msk [vmem:[%s444 + $0x20] sm:$0xff] %vm497, %v2291
        %2300 = vst.msk [vmem:[%s444 + $0x28] sm:$0xff] %vm497, %v2292
        %2301 = vst.msk [vmem:[%s444 + $0x30] sm:$0xff] %vm497, %v2293
        %2302 = vst.msk [vmem:[%s444 + $0x38] sm:$0xff] %vm497, %v2294
        %s2303 = sand.u32 %s274, 1
        %s2304 = scalar_lea.sflag [#allocation6], %s2303
        %s2305 = sand.u32 %s274, 1
        %s2306 = smul.addr %s2305, 64
        %s2307 = scalar_lea.vmem [#allocation12], %s2306
        // Predicated region
        $region81: #{tpu_custom_call.1} parent=63 // pred_check
          %p2308 = pneg %p284
        $region82: #{tpu_custom_call.1} parent=63 // pred_check_branch
          %2310 = sbr.rel (%p2308) target = $region84
        $region83: #{tpu_custom_call.1} parent=63 // pred_region
          %s2312 = ssub.s32 1024, 1024
          %2313 = vsyncadd %s2304, %s2312
          %s2314 = smul.addr %s30, 8
          %s2315 = smul.addr %s2314, 128
          %s2316 = scalar_lea.hbm %s11, %s2315
          %s2317 = sshll.u32 %s2307, 4
          %s2318 = int_to_ptr.vmem [resolvable:$true] %s2317
          %2323 = dma.vmem_to_hbm [thread:$0]  %s2318, 1024, %s2316, %s2304, 128, 128, 8
        $region84: #{tpu_custom_call.1} parent=63 // pred_fallthru
          _
      $region64: #{tpu_custom_call.1} parent=5 // pred_fallthru
        _
      %p2324 = scmp.le.s32.totalorder 2, %s25
      // Predicated region
      $region85: #{tpu_custom_call.1} parent=5 // pred_check
        %p2325 = pneg %p2324
      $region86: #{tpu_custom_call.1} parent=5 // pred_check_branch
        %2327 = sbr.rel (%p2325) target = $region88
      $region87: #{tpu_custom_call.1} parent=5 // pred_region
        %s2328 = ssub.s32 %s25, 2
        // Predicated region
        $region89: #{tpu_custom_call.1} parent=87 // pred_check
          %p2329 = pneg %p290
        $region90: #{tpu_custom_call.1} parent=87 // pred_check_branch
          %2331 = sbr.rel (%p2329) target = $region92
        $region91: #{tpu_custom_call.1} parent=87 // pred_region
          %s2332 = sand.u32 %s275, 1
          %s2333 = scalar_lea.sflag [#allocation6], %s2332
          %s2334 = sand.u32 %s275, 1
          %s2335 = smul.addr %s2334, 64
          %s2336 = scalar_lea.vmem [#allocation12], %s2335
          %2337 = dma.done %s2333, 1024
        $region92: #{tpu_custom_call.1} parent=87 // pred_fallthru
          _
      $region88: #{tpu_custom_call.1} parent=5 // pred_fallthru
        _
    $region6: #{tpu_custom_call.1} parent=1 // loop_footer
      %s29 = sadd.s32 1, %s25
    $region7: #{tpu_custom_call.1} parent=1 // loop_footer_branch
      %24 = sbr.rel target = $region3
    $region8: #{tpu_custom_call.1} parent=1 // loop_exit
      _
    %2338 = vsyncpa [#allocation5], 1
    %s2339 = scalar_lea.sflag [#allocation5], 1
    %2340 = vsyncpa %s2339, 1
    %2341 = vsyncpa [#allocation8], 1
    %2342 = vsyncpa [#allocation11], 1
    %2343 = vsyncpa [#allocation6], 1
    %s2344 = scalar_lea.sflag [#allocation6], 1
    %2345 = vsyncpa %s2344, 1

</llo_original>
